<compile_context>
chip_gen: v6e
topology: v6e:2x2x1
jax: 0.10.0
libtpu: 0.0.40
codegen_flags: <defaults>
</compile_context>

<pallas_src>
import functools

import jax
import jax.numpy as jnp
from jax.experimental import pallas as pl
from jax.experimental.pallas import tpu as pltpu


def _default_vmem_limit():
    # v5e/v6e: 128 MiB physical -> ~96 MiB scoped; v7x: 64 MiB -> ~48 MiB.
    try:
        cap = pltpu.get_tpu_info().vmem_capacity_bytes
        return int(min(100 * 1024 * 1024, cap * 3 // 4))
    except Exception:
        return 48 * 1024 * 1024


# --------------------------------------------------------------------------
# Pass 1: LayerNorm(x) @ W_qkv  ->  qkv (bf16), q pre-scaled by dim_head**-0.5
# --------------------------------------------------------------------------
def _ln_qkv_kernel(x_ref, g_ref, b_ref, wqkv_ref, *out_refs, inner, scale):
    eps = 1e-5
    x = x_ref[0].astype(jnp.float32)                        # (tr, D)
    mu = jnp.mean(x, axis=-1, keepdims=True)
    var = jnp.mean((x - mu) ** 2, axis=-1, keepdims=True)
    xn = (x - mu) * jax.lax.rsqrt(var + eps)
    xn = xn * g_ref[0] + b_ref[0]
    qkv = jnp.dot(xn.astype(jnp.bfloat16), wqkv_ref[...],
                  preferred_element_type=jnp.float32)       # (tr, 3*inner) f32
    if len(out_refs) == 1:                                  # fused qkv output
        o = out_refs[0]
        o[0, :, :inner] = (qkv[:, :inner] * scale).astype(o.dtype)
        o[0, :, inner:] = qkv[:, inner:].astype(o.dtype)
    else:                                                   # separate q / k / v
        q_ref, k_ref, v_ref = out_refs
        q_ref[0] = (qkv[:, 0 * inner:1 * inner] * scale).astype(q_ref.dtype)
        k_ref[0] = qkv[:, 1 * inner:2 * inner].astype(k_ref.dtype)
        v_ref[0] = qkv[:, 2 * inner:3 * inner].astype(v_ref.dtype)


# --------------------------------------------------------------------------
# Pass 2: flash attention over key tiles + out-proj + residual + LN2 + FF
# --------------------------------------------------------------------------
def _attn_ff_kernel(x_ref, q_ref, k_ref, v_ref,
                    wout_ref, bout_ref, ln2_g_ref, ln2_b_ref,
                    w1_ref, b1_ref, w2_ref, b2_ref,
                    o_ref,
                    acc_ref, m_ref, l_ref,
                    *, heads, dim_head):
    kv = pl.program_id(2)
    nk = pl.num_programs(2)
    dh = dim_head
    eps = 1e-5

    @pl.when(kv == 0)
    def _():
        acc_ref[...] = jnp.zeros_like(acc_ref)
        m_ref[...] = jnp.full_like(m_ref, -jnp.inf)
        l_ref[...] = jnp.zeros_like(l_ref)

    q = q_ref[0]          # (tq, inner) bf16, already scaled by dim_head**-0.5
    k = k_ref[0]          # (tk, inner) bf16
    v = v_ref[0]          # (tk, inner) bf16

    # Online-softmax update for one key tile; heads unrolled (static), all 2-D.
    for h in range(heads):
        sl = slice(h * dh, (h + 1) * dh)
        s = jax.lax.dot_general(                            # (tq, tk) f32
            q[:, sl], k[:, sl], (((1,), (1,)), ((), ())),
            preferred_element_type=jnp.float32)
        m_prev = m_ref[h]                                   # (tq, 1)
        m_new = jnp.maximum(m_prev, jnp.max(s, axis=-1, keepdims=True))
        alpha = jnp.exp(m_prev - m_new)
        p = jnp.exp(s - m_new)                              # (tq, tk)
        l_ref[h] = alpha * l_ref[h] + jnp.sum(p, axis=-1, keepdims=True)
        pv = jnp.dot(p.astype(jnp.bfloat16), v[:, sl],
                     preferred_element_type=jnp.float32)    # (tq, dh)
        acc_ref[:, sl] = alpha * acc_ref[:, sl] + pv
        m_ref[h] = m_new

    @pl.when(kv == nk - 1)
    def _():
        # Normalize per head in place (epilogue only), then one lane-dense read.
        for h in range(heads):
            sl = slice(h * dh, (h + 1) * dh)
            acc_ref[:, sl] = acc_ref[:, sl] * (1.0 / l_ref[h])
        attn_o = acc_ref[...]                               # (tq, inner) f32

        proj = jnp.dot(attn_o.astype(jnp.bfloat16), wout_ref[...],
                       preferred_element_type=jnp.float32) + bout_ref[0]
        x1 = proj + x_ref[0].astype(jnp.float32)            # residual 1

        mu = jnp.mean(x1, axis=-1, keepdims=True)
        var = jnp.mean((x1 - mu) ** 2, axis=-1, keepdims=True)
        x1n = (x1 - mu) * jax.lax.rsqrt(var + eps)
        x1n = x1n * ln2_g_ref[0] + ln2_b_ref[0]

        h1 = jnp.dot(x1n.astype(jnp.bfloat16), w1_ref[...],
                     preferred_element_type=jnp.float32) + b1_ref[0]
        h1 = jax.nn.gelu(h1, approximate=False)             # PyTorch nn.GELU default
        ff = jnp.dot(h1.astype(jnp.bfloat16), w2_ref[...],
                     preferred_element_type=jnp.float32) + b2_ref[0]
        o_ref[0] = (ff + x1).astype(o_ref.dtype)            # residual 2


# --------------------------------------------------------------------------
# Wrapper
# --------------------------------------------------------------------------
def t_block(x, params, *, heads, dim_head, q_tile=256, k_tile=256,
            single_buffer_weights=True, vmem_limit_bytes=None):
    """x: (B, N, D) float32."""
    B, N, D = x.shape
    inner = heads * dim_head
    mlp_dim = params['w1'].shape[1]
    scale = dim_head ** -0.5

    tq = min(q_tile, N)
    tk = min(k_tile, N)
    assert N % tq == 0 and N % tk == 0, "N must be divisible by the tile sizes"

    if vmem_limit_bytes is None:
        vmem_limit_bytes = _default_vmem_limit()

    # bf16 weights: halve HBM DMA and VMEM residency, feed the bf16 MXU.
    wqkv = params['wqkv'].astype(jnp.bfloat16)
    wout = params['wout'].astype(jnp.bfloat16)
    w1 = params['w1'].astype(jnp.bfloat16)
    w2 = params['w2'].astype(jnp.bfloat16)

    # Grid-invariant (weight / bias) blocks: single-buffered — they never
    # change across the grid, so double-buffering only wastes VMEM.
    wb_mode = pl.Buffered(1) if single_buffer_weights else None

    def inv(shape):
        return pl.BlockSpec(shape, lambda *idx: (0,) * len(shape),
                            pipeline_mode=wb_mode)

    # ---------------- pass 1: LN1 + QKV ----------------
    fused = (inner % 128 == 0)   # fused qkv slab needs lane-aligned slicing
    cost1 = pl.CostEstimate(
        flops=int(2 * B * N * D * 3 * inner),
        transcendentals=int(B * N),
        bytes_accessed=int(B * N * D * 4 + D * 3 * inner * 2
                           + 3 * B * N * inner * 2 + 2 * D * 4),
    )
    if fused:
        out_shape1 = jax.ShapeDtypeStruct((B, N, 3 * inner), jnp.bfloat16)
        out_specs1 = pl.BlockSpec((1, tq, 3 * inner), lambda b, r: (b, r, 0))
    else:
        out_shape1 = tuple(jax.ShapeDtypeStruct((B, N, inner), jnp.bfloat16)
                           for _ in range(3))
        out_specs1 = [pl.BlockSpec((1, tq, inner), lambda b, r: (b, r, 0))] * 3

    qkv_out = pl.pallas_call(
        functools.partial(_ln_qkv_kernel, inner=inner, scale=scale),
        out_shape=out_shape1,
        grid_spec=pltpu.PrefetchScalarGridSpec(
            num_scalar_prefetch=0,
            grid=(B, N // tq),
            in_specs=[
                pl.BlockSpec((1, tq, D), lambda b, r: (b, r, 0)),   # x
                inv((1, D)), inv((1, D)),                           # ln1 gamma/beta
                inv((D, 3 * inner)),                                # W_qkv (bf16)
            ],
            out_specs=out_specs1,
        ),
        compiler_params=pltpu.CompilerParams(
            dimension_semantics=("parallel", "parallel"),
            vmem_limit_bytes=vmem_limit_bytes),
        cost_estimate=cost1,
    )(x, params['ln1_g'], params['ln1_b'], wqkv)

    if fused:
        q_in = k_in = v_in = qkv_out
        q_spec = pl.BlockSpec((1, tq, inner), lambda b, i, j: (b, i, 0))
        k_spec = pl.BlockSpec((1, tk, inner), lambda b, i, j: (b, j, 1))
        v_spec = pl.BlockSpec((1, tk, inner), lambda b, i, j: (b, j, 2))
    else:
        q_in, k_in, v_in = qkv_out
        q_spec = pl.BlockSpec((1, tq, inner), lambda b, i, j: (b, i, 0))
        k_spec = pl.BlockSpec((1, tk, inner), lambda b, i, j: (b, j, 0))
        v_spec = pl.BlockSpec((1, tk, inner), lambda b, i, j: (b, j, 0))

    # ---------------- pass 2: attention + FF ----------------
    cost2 = pl.CostEstimate(
        flops=int(4 * B * N * N * inner + 2 * B * N * inner * D
                  + 4 * B * N * D * mlp_dim),
        transcendentals=int(B * heads * N * N + B * N * mlp_dim + B * N),
        bytes_accessed=int(B * N * D * 4 * 2 + 3 * B * N * inner * 2
                           + (inner * D + 2 * D * mlp_dim) * 2
                           + (3 * D + mlp_dim) * 4),
    )
    out = pl.pallas_call(
        functools.partial(_attn_ff_kernel, heads=heads, dim_head=dim_head),
        out_shape=jax.ShapeDtypeStruct((B, N, D), x.dtype),
        grid_spec=pltpu.PrefetchScalarGridSpec(
            num_scalar_prefetch=0,
            grid=(B, N // tq, N // tk),
            in_specs=[
                pl.BlockSpec((1, tq, D), lambda b, i, j: (b, i, 0)),  # x (residual)
                q_spec, k_spec, v_spec,
                inv((inner, D)), inv((1, D)),                         # W_out, b_out
                inv((1, D)), inv((1, D)),                             # ln2 gamma/beta
                inv((D, mlp_dim)), inv((1, mlp_dim)),                 # W1, b1
                inv((mlp_dim, D)), inv((1, D)),                       # W2, b2
            ],
            out_specs=pl.BlockSpec((1, tq, D), lambda b, i, j: (b, i, 0)),
            scratch_shapes=[
                pltpu.VMEM((tq, inner), jnp.float32),   # acc (one slab, per-head cols)
                pltpu.VMEM((heads, tq, 1), jnp.float32),  # running max
                pltpu.VMEM((heads, tq, 1), jnp.float32),  # running sum
            ],
        ),
        compiler_params=pltpu.CompilerParams(
            dimension_semantics=("parallel", "parallel", "arbitrary"),
            vmem_limit_bytes=vmem_limit_bytes),
        cost_estimate=cost2,
    )(x, q_in, k_in, v_in,
      wout, params['bout'], params['ln2_g'], params['ln2_b'],
      w1, params['b1'], w2, params['b2'])
    return out


# --------------------------------------------------------------------------
# Params + reference (matches the PyTorch module, dropout=0).  The reference
# casts matmul operands to bf16 exactly like the kernel so the test tolerance
# can be tight (2e-2) instead of masking bugs at 1e-1.
# --------------------------------------------------------------------------
def init_params(key, dim, heads, dim_head, mlp_dim):
    inner = heads * dim_head
    ks = jax.random.split(key, 6)
    return {
        'ln1_g': jnp.ones((1, dim), jnp.float32),
        'ln1_b': jnp.zeros((1, dim), jnp.float32),
        'wqkv': jax.random.normal(ks[0], (dim, 3 * inner), jnp.float32) * dim ** -0.5,
        'wout': jax.random.normal(ks[1], (inner, dim), jnp.float32) * inner ** -0.5,
        'bout': jax.random.normal(ks[2], (1, dim), jnp.float32) * 0.02,
        'ln2_g': jnp.ones((1, dim), jnp.float32),
        'ln2_b': jnp.zeros((1, dim), jnp.float32),
        'w1': jax.random.normal(ks[3], (dim, mlp_dim), jnp.float32) * dim ** -0.5,
        'b1': jax.random.normal(ks[4], (1, mlp_dim), jnp.float32) * 0.02,
        'w2': jax.random.normal(ks[5], (mlp_dim, dim), jnp.float32) * mlp_dim ** -0.5,
        'b2': jnp.zeros((1, dim), jnp.float32),
    }


def t_block_ref(x, p, *, heads, dim_head, match_kernel_precision=True):
    cast = ((lambda a: a.astype(jnp.bfloat16)) if match_kernel_precision
            else (lambda a: a))

    def mm(a, b):
        return jnp.dot(cast(a), cast(b), preferred_element_type=jnp.float32)

    def ln(z, g, b):
        mu = jnp.mean(z, -1, keepdims=True)
        var = jnp.mean((z - mu) ** 2, -1, keepdims=True)
        return (z - mu) * jax.lax.rsqrt(var + 1e-5) * g + b

    B, N, D = x.shape
    inner = heads * dim_head
    xn = ln(x, p['ln1_g'][0], p['ln1_b'][0])
    qkv = mm(xn, p['wqkv'])
    q, k, v = jnp.split(qkv, 3, axis=-1)
    q = q * dim_head ** -0.5

    def hsplit(t):
        return t.reshape(B, N, heads, dim_head).transpose(0, 2, 1, 3)

    q, k, v = hsplit(q), hsplit(k), hsplit(v)
    dots = jnp.einsum('bhnd,bhmd->bhnm', cast(q), cast(k),
                      preferred_element_type=jnp.float32)
    attn = jax.nn.softmax(dots, axis=-1)
    out = jnp.einsum('bhnm,bhmd->bhnd', cast(attn), cast(v),
                     preferred_element_type=jnp.float32)
    out = out.transpose(0, 2, 1, 3).reshape(B, N, inner)
    x1 = mm(out, p['wout']) + p['bout'][0] + x
    x1n = ln(x1, p['ln2_g'][0], p['ln2_b'][0])
    h = jax.nn.gelu(mm(x1n, p['w1']) + p['b1'][0], approximate=False)
    return mm(h, p['w2']) + p['b2'][0] + x1


if __name__ == "__main__":
    # Small but representative: last dims are (8,128)-aligned, inner = 128,
    # and tile override 128 gives 2 q tiles x 2 kv tiles so the multi-step
    # online-softmax path is exercised.
    B, N, dim = 2, 256, 128
    heads, dim_head, mlp_dim = 2, 64, 256

    key = jax.random.PRNGKey(0)
    kx, kp = jax.random.split(key)
    x = jax.random.normal(kx, (B, N, dim), jnp.float32)
    params = init_params(kp, dim, heads, dim_head, mlp_dim)

    run = functools.partial(t_block, x, params, heads=heads, dim_head=dim_head,
                            q_tile=128, k_tile=128)
    try:
        out = jax.block_until_ready(run())
    except Exception:
        # Conservative fallback (no single-buffered weight specs, 32 MiB VMEM
        # cap) in case the tuned config fails to lower on this TPU/jax build.
        out = jax.block_until_ready(run(single_buffer_weights=False,
                                        vmem_limit_bytes=32 * 1024 * 1024))

    ref = t_block_ref(x, params, heads=heads, dim_head=dim_head)
    assert out.shape == (B, N, dim)
    max_err = float(jnp.max(jnp.abs(out - ref)))
    assert jnp.allclose(out, ref, atol=2e-2, rtol=2e-2), max_err

    print("KERNEL_OK")
</pallas_src>

<mosaic_0001>
module attributes {stable_mosaic.version = 11 : i64} {
  func.func @_ln_qkv_kernel(%arg0: i32, %arg1: i32, %arg2: memref<1x128x128xf32, #tpu.memory_space<vmem>>, %arg3: memref<1x128xf32, #tpu.memory_space<vmem>>, %arg4: memref<1x128xf32, #tpu.memory_space<vmem>>, %arg5: memref<128x384xbf16, #tpu.memory_space<vmem>>, %arg6: memref<1x128x384xbf16, #tpu.memory_space<vmem>>) attributes {dimension_semantics = [#tpu.dimension_semantics<parallel>, #tpu.dimension_semantics<parallel>], iteration_bounds = array<i64: 2, 2>, scalar_prefetch = 0 : i64, scratch_operands = 0 : i64, tpu.core_type = #tpu.core_type<tc>, window_params = [{transform_indices = @transform_0, window_bounds = array<i64: 1, 128, 128>}, {pipeline_mode = #tpu.pipeline_mode<synchronous>, transform_indices = @transform_1, window_bounds = array<i64: 1, 128>}, {pipeline_mode = #tpu.pipeline_mode<synchronous>, transform_indices = @transform_2, window_bounds = array<i64: 1, 128>}, {pipeline_mode = #tpu.pipeline_mode<synchronous>, transform_indices = @transform_3, window_bounds = array<i64: 128, 384>}, {transform_indices = @transform_4, window_bounds = array<i64: 1, 128, 384>}]} {
    %c0 = arith.constant 0 : index
    %c0_0 = arith.constant 0 : index
    %c0_1 = arith.constant 0 : index
    %0 = vector.load %arg2[%c0, %c0_0, %c0_1] : memref<1x128x128xf32, #tpu.memory_space<vmem>>, vector<1x128x128xf32>
    %1 = vector.shape_cast %0 : vector<1x128x128xf32> to vector<128x128xf32>
    %cst = arith.constant dense<0.000000e+00> : vector<128xf32>
    %2 = vector.multi_reduction <add>, %1, %cst [1] : vector<128x128xf32> to vector<128xf32>
    %3 = vector.shape_cast %2 : vector<128xf32> to vector<128x1xf32>
    %cst_2 = arith.constant 1.280000e+02 : f32
    %4 = vector.broadcast %cst_2 : f32 to vector<128x1xf32>
    %5 = arith.divf %3, %4 : vector<128x1xf32>
    %6 = vector.broadcast %5 : vector<128x1xf32> to vector<128x128xf32>
    %7 = arith.subf %1, %6 : vector<128x128xf32>
    %8 = arith.mulf %7, %7 : vector<128x128xf32>
    %cst_3 = arith.constant dense<0.000000e+00> : vector<128xf32>
    %9 = vector.multi_reduction <add>, %8, %cst_3 [1] : vector<128x128xf32> to vector<128xf32>
    %10 = vector.shape_cast %9 : vector<128xf32> to vector<128x1xf32>
    %cst_4 = arith.constant 1.280000e+02 : f32
    %11 = vector.broadcast %cst_4 : f32 to vector<128x1xf32>
    %12 = arith.divf %10, %11 : vector<128x1xf32>
    %13 = vector.broadcast %5 : vector<128x1xf32> to vector<128x128xf32>
    %14 = arith.subf %1, %13 : vector<128x128xf32>
    %cst_5 = arith.constant 9.99999974E-6 : f32
    %15 = vector.broadcast %cst_5 : f32 to vector<128x1xf32>
    %16 = arith.addf %12, %15 : vector<128x1xf32>
    %17 = math.rsqrt %16 : vector<128x1xf32>
    %18 = vector.broadcast %17 : vector<128x1xf32> to vector<128x128xf32>
    %19 = arith.mulf %14, %18 : vector<128x128xf32>
    %c0_6 = arith.constant 0 : index
    %c0_7 = arith.constant 0 : index
    %20 = vector.load %arg3[%c0_6, %c0_7] : memref<1x128xf32, #tpu.memory_space<vmem>>, vector<1x128xf32>
    %21 = vector.shape_cast %20 : vector<1x128xf32> to vector<128xf32>
    %22 = vector.shape_cast %21 : vector<128xf32> to vector<1x128xf32>
    %23 = vector.broadcast %22 : vector<1x128xf32> to vector<128x128xf32>
    %24 = arith.mulf %19, %23 : vector<128x128xf32>
    %c0_8 = arith.constant 0 : index
    %c0_9 = arith.constant 0 : index
    %25 = vector.load %arg4[%c0_8, %c0_9] : memref<1x128xf32, #tpu.memory_space<vmem>>, vector<1x128xf32>
    %26 = vector.shape_cast %25 : vector<1x128xf32> to vector<128xf32>
    %27 = vector.shape_cast %26 : vector<128xf32> to vector<1x128xf32>
    %28 = vector.broadcast %27 : vector<1x128xf32> to vector<128x128xf32>
    %29 = arith.addf %24, %28 : vector<128x128xf32>
    %30 = arith.truncf %29 : vector<128x128xf32> to vector<128x128xbf16>
    %c0_10 = arith.constant 0 : index
    %c0_11 = arith.constant 0 : index
    %31 = vector.load %arg5[%c0_10, %c0_11] : memref<128x384xbf16, #tpu.memory_space<vmem>>, vector<128x384xbf16>
    %cst_12 = arith.constant dense<0.000000e+00> : vector<128x384xf32>
    %32 = tpu.matmul %30, %31, %cst_12 {dimension_numbers = #tpu.dot_dimension_numbers<[1], [0], [0], [1], [0, 0, 1, 1], [], []>} : vector<128x128xbf16>, vector<128x384xbf16>, vector<128x384xf32> -> vector<128x384xf32>
    %33 = vector.extract_strided_slice %32 {offsets = [0, 0], sizes = [128, 128], strides = [1, 1]} : vector<128x384xf32> to vector<128x128xf32>
    %cst_13 = arith.constant 1.250000e-01 : f32
    %34 = vector.broadcast %cst_13 : f32 to vector<128x128xf32>
    %35 = arith.mulf %33, %34 : vector<128x128xf32>
    %36 = arith.truncf %35 : vector<128x128xf32> to vector<128x128xbf16>
    %c0_14 = arith.constant 0 : index
    %c0_15 = arith.constant 0 : index
    %c0_16 = arith.constant 0 : index
    %37 = vector.load %arg6[%c0_14, %c0_15, %c0_16] : memref<1x128x384xbf16, #tpu.memory_space<vmem>>, vector<1x128x128xbf16>
    %38 = vector.shape_cast %37 : vector<1x128x128xbf16> to vector<128x128xbf16>
    %39 = vector.shape_cast %36 : vector<128x128xbf16> to vector<1x128x128xbf16>
    tpu.vector_store %arg6[%c0_14, %c0_15, %c0_16], %39 {strides = array<i32>} : memref<1x128x384xbf16, #tpu.memory_space<vmem>>, vector<1x128x128xbf16>,
    %40 = vector.extract_strided_slice %32 {offsets = [0, 128], sizes = [128, 256], strides = [1, 1]} : vector<128x384xf32> to vector<128x256xf32>
    %41 = arith.truncf %40 : vector<128x256xf32> to vector<128x256xbf16>
    %c0_17 = arith.constant 0 : index
    %c0_18 = arith.constant 0 : index
    %c128 = arith.constant 128 : index
    %42 = vector.load %arg6[%c0_17, %c0_18, %c128] : memref<1x128x384xbf16, #tpu.memory_space<vmem>>, vector<1x128x256xbf16>
    %43 = vector.shape_cast %42 : vector<1x128x256xbf16> to vector<128x256xbf16>
    %44 = vector.shape_cast %41 : vector<128x256xbf16> to vector<1x128x256xbf16>
    tpu.vector_store %arg6[%c0_17, %c0_18, %c128], %44 {strides = array<i32>} : memref<1x128x384xbf16, #tpu.memory_space<vmem>>, vector<1x128x256xbf16>,
    return
  }
  func.func @transform_0(%arg0: i32, %arg1: i32) -> (i32, i32, i32) {
    %c0_i32 = arith.constant 0 : i32
    %c0_i32_0 = arith.constant 0 : i32
    return %arg0, %arg1, %c0_i32 : i32, i32, i32
  }
  func.func @transform_1(%arg0: i32, %arg1: i32) -> (i32, i32) {
    %c0_i32 = arith.constant 0 : i32
    %c0_i32_0 = arith.constant 0 : i32
    %c0_i32_1 = arith.constant 0 : i32
    return %c0_i32, %c0_i32_0 : i32, i32
  }
  func.func @transform_2(%arg0: i32, %arg1: i32) -> (i32, i32) {
    %c0_i32 = arith.constant 0 : i32
    %c0_i32_0 = arith.constant 0 : i32
    %c0_i32_1 = arith.constant 0 : i32
    return %c0_i32, %c0_i32_0 : i32, i32
  }
  func.func @transform_3(%arg0: i32, %arg1: i32) -> (i32, i32) {
    %c0_i32 = arith.constant 0 : i32
    %c0_i32_0 = arith.constant 0 : i32
    %c0_i32_1 = arith.constant 0 : i32
    return %c0_i32, %c0_i32_0 : i32, i32
  }
  func.func @transform_4(%arg0: i32, %arg1: i32) -> (i32, i32, i32) {
    %c0_i32 = arith.constant 0 : i32
    %c0_i32_0 = arith.constant 0 : i32
    return %arg0, %arg1, %c0_i32 : i32, i32, i32
  }
}

module attributes {stable_mosaic.version = 11 : i64} {
  func.func @_ln_qkv_kernel(%arg0: i32, %arg1: i32, %arg2: memref<1x128x128xf32, #tpu.memory_space<vmem>>, %arg3: memref<1x128xf32, #tpu.memory_space<vmem>>, %arg4: memref<1x128xf32, #tpu.memory_space<vmem>>, %arg5: memref<128x384xbf16, #tpu.memory_space<vmem>>, %arg6: memref<1x128x384xbf16, #tpu.memory_space<vmem>>) attributes {dimension_semantics = [#tpu.dimension_semantics<parallel>, #tpu.dimension_semantics<parallel>], iteration_bounds = array<i64: 2, 2>, scalar_prefetch = 0 : i64, scratch_operands = 0 : i64, tpu.core_type = #tpu.core_type<tc>, window_params = [{transform_indices = @transform_0, window_bounds = array<i64: 1, 128, 128>}, {pipeline_mode = #tpu.pipeline_mode<synchronous>, transform_indices = @transform_1, window_bounds = array<i64: 1, 128>}, {pipeline_mode = #tpu.pipeline_mode<synchronous>, transform_indices = @transform_2, window_bounds = array<i64: 1, 128>}, {pipeline_mode = #tpu.pipeline_mode<synchronous>, transform_indices = @transform_3, window_bounds = array<i64: 128, 384>}, {transform_indices = @transform_4, window_bounds = array<i64: 1, 128, 384>}]} {
    %c0 = arith.constant 0 : index
    %c0_0 = arith.constant 0 : index
    %c0_1 = arith.constant 0 : index
    %0 = vector.load %arg2[%c0, %c0_0, %c0_1] : memref<1x128x128xf32, #tpu.memory_space<vmem>>, vector<1x128x128xf32>
    %1 = vector.shape_cast %0 : vector<1x128x128xf32> to vector<128x128xf32>
    %cst = arith.constant dense<0.000000e+00> : vector<128xf32>
    %2 = vector.multi_reduction <add>, %1, %cst [1] : vector<128x128xf32> to vector<128xf32>
    %3 = vector.shape_cast %2 : vector<128xf32> to vector<128x1xf32>
    %cst_2 = arith.constant 1.280000e+02 : f32
    %4 = vector.broadcast %cst_2 : f32 to vector<128x1xf32>
    %5 = arith.divf %3, %4 : vector<128x1xf32>
    %6 = vector.broadcast %5 : vector<128x1xf32> to vector<128x128xf32>
    %7 = arith.subf %1, %6 : vector<128x128xf32>
    %8 = arith.mulf %7, %7 : vector<128x128xf32>
    %cst_3 = arith.constant dense<0.000000e+00> : vector<128xf32>
    %9 = vector.multi_reduction <add>, %8, %cst_3 [1] : vector<128x128xf32> to vector<128xf32>
    %10 = vector.shape_cast %9 : vector<128xf32> to vector<128x1xf32>
    %cst_4 = arith.constant 1.280000e+02 : f32
    %11 = vector.broadcast %cst_4 : f32 to vector<128x1xf32>
    %12 = arith.divf %10, %11 : vector<128x1xf32>
    %13 = vector.broadcast %5 : vector<128x1xf32> to vector<128x128xf32>
    %14 = arith.subf %1, %13 : vector<128x128xf32>
    %cst_5 = arith.constant 9.99999974E-6 : f32
    %15 = vector.broadcast %cst_5 : f32 to vector<128x1xf32>
    %16 = arith.addf %12, %15 : vector<128x1xf32>
    %17 = math.rsqrt %16 : vector<128x1xf32>
    %18 = vector.broadcast %17 : vector<128x1xf32> to vector<128x128xf32>
    %19 = arith.mulf %14, %18 : vector<128x128xf32>
    %c0_6 = arith.constant 0 : index
    %c0_7 = arith.constant 0 : index
    %20 = vector.load %arg3[%c0_6, %c0_7] : memref<1x128xf32, #tpu.memory_space<vmem>>, vector<1x128xf32>
    %21 = vector.shape_cast %20 : vector<1x128xf32> to vector<128xf32>
    %22 = vector.shape_cast %21 : vector<128xf32> to vector<1x128xf32>
    %23 = vector.broadcast %22 : vector<1x128xf32> to vector<128x128xf32>
    %24 = arith.mulf %19, %23 : vector<128x128xf32>
    %c0_8 = arith.constant 0 : index
    %c0_9 = arith.constant 0 : index
    %25 = vector.load %arg4[%c0_8, %c0_9] : memref<1x128xf32, #tpu.memory_space<vmem>>, vector<1x128xf32>
    %26 = vector.shape_cast %25 : vector<1x128xf32> to vector<128xf32>
    %27 = vector.shape_cast %26 : vector<128xf32> to vector<1x128xf32>
    %28 = vector.broadcast %27 : vector<1x128xf32> to vector<128x128xf32>
    %29 = arith.addf %24, %28 : vector<128x128xf32>
    %30 = arith.truncf %29 : vector<128x128xf32> to vector<128x128xbf16>
    %c0_10 = arith.constant 0 : index
    %c0_11 = arith.constant 0 : index
    %31 = vector.load %arg5[%c0_10, %c0_11] : memref<128x384xbf16, #tpu.memory_space<vmem>>, vector<128x384xbf16>
    %cst_12 = arith.constant dense<0.000000e+00> : vector<128x384xf32>
    %32 = tpu.matmul %30, %31, %cst_12 {dimension_numbers = #tpu.dot_dimension_numbers<[1], [0], [0], [1], [0, 0, 1, 1], [], []>} : vector<128x128xbf16>, vector<128x384xbf16>, vector<128x384xf32> -> vector<128x384xf32>
    %33 = vector.extract_strided_slice %32 {offsets = [0, 0], sizes = [128, 128], strides = [1, 1]} : vector<128x384xf32> to vector<128x128xf32>
    %cst_13 = arith.constant 1.250000e-01 : f32
    %34 = vector.broadcast %cst_13 : f32 to vector<128x128xf32>
    %35 = arith.mulf %33, %34 : vector<128x128xf32>
    %36 = arith.truncf %35 : vector<128x128xf32> to vector<128x128xbf16>
    %c0_14 = arith.constant 0 : index
    %c0_15 = arith.constant 0 : index
    %c0_16 = arith.constant 0 : index
    %37 = vector.load %arg6[%c0_14, %c0_15, %c0_16] : memref<1x128x384xbf16, #tpu.memory_space<vmem>>, vector<1x128x128xbf16>
    %38 = vector.shape_cast %37 : vector<1x128x128xbf16> to vector<128x128xbf16>
    %39 = vector.shape_cast %36 : vector<128x128xbf16> to vector<1x128x128xbf16>
    tpu.vector_store %arg6[%c0_14, %c0_15, %c0_16], %39 {strides = array<i32>} : memref<1x128x384xbf16, #tpu.memory_space<vmem>>, vector<1x128x128xbf16>,
    %40 = vector.extract_strided_slice %32 {offsets = [0, 128], sizes = [128, 256], strides = [1, 1]} : vector<128x384xf32> to vector<128x256xf32>
    %41 = arith.truncf %40 : vector<128x256xf32> to vector<128x256xbf16>
    %c0_17 = arith.constant 0 : index
    %c0_18 = arith.constant 0 : index
    %c128 = arith.constant 128 : index
    %42 = vector.load %arg6[%c0_17, %c0_18, %c128] : memref<1x128x384xbf16, #tpu.memory_space<vmem>>, vector<1x128x256xbf16>
    %43 = vector.shape_cast %42 : vector<1x128x256xbf16> to vector<128x256xbf16>
    %44 = vector.shape_cast %41 : vector<128x256xbf16> to vector<1x128x256xbf16>
    tpu.vector_store %arg6[%c0_17, %c0_18, %c128], %44 {strides = array<i32>} : memref<1x128x384xbf16, #tpu.memory_space<vmem>>, vector<1x128x256xbf16>,
    return
  }
  func.func @transform_0(%arg0: i32, %arg1: i32) -> (i32, i32, i32) {
    %c0_i32 = arith.constant 0 : i32
    %c0_i32_0 = arith.constant 0 : i32
    return %arg0, %arg1, %c0_i32 : i32, i32, i32
  }
  func.func @transform_1(%arg0: i32, %arg1: i32) -> (i32, i32) {
    %c0_i32 = arith.constant 0 : i32
    %c0_i32_0 = arith.constant 0 : i32
    %c0_i32_1 = arith.constant 0 : i32
    return %c0_i32, %c0_i32_0 : i32, i32
  }
  func.func @transform_2(%arg0: i32, %arg1: i32) -> (i32, i32) {
    %c0_i32 = arith.constant 0 : i32
    %c0_i32_0 = arith.constant 0 : i32
    %c0_i32_1 = arith.constant 0 : i32
    return %c0_i32, %c0_i32_0 : i32, i32
  }
  func.func @transform_3(%arg0: i32, %arg1: i32) -> (i32, i32) {
    %c0_i32 = arith.constant 0 : i32
    %c0_i32_0 = arith.constant 0 : i32
    %c0_i32_1 = arith.constant 0 : i32
    return %c0_i32, %c0_i32_0 : i32, i32
  }
  func.func @transform_4(%arg0: i32, %arg1: i32) -> (i32, i32, i32) {
    %c0_i32 = arith.constant 0 : i32
    %c0_i32_0 = arith.constant 0 : i32
    return %arg0, %arg1, %c0_i32 : i32, i32, i32
  }
}

</mosaic_0001>

<llo_original>
// kernel: tpu_custom_call.1
$region0: #{tpu_custom_call.1}
  #allocation0 [shape = 'u32[]', space=smem, size = 0x4, offset = 0x4, fixed_abs, tag = 'smem constant byte address 0x4 - core index']
  #allocation1 [shape = 'u32[144,128]{1,0:T(1,128)}', space=vmem, size = 0x12000, scoped, tag = 'internal scratch']
  %s0 = inlined_call_operand.hbm [shape: f32[2,256,128], index: 0, kind: input, shape index: {}]
  %s1 = inlined_call_operand.vmem [shape: f32[1,128], index: 1, kind: input, shape index: {}]
  %s2 = inlined_call_operand.vmem [shape: f32[1,128], index: 2, kind: input, shape index: {}]
  %s3 = inlined_call_operand.hbm [shape: bf16[128,384], index: 3, kind: input, shape index: {}]
  %s4 = inlined_call_operand.hbm [shape: bf16[2,256,384], index: 4, kind: output, shape index: {}]
  %s5 = sld [smem:[#allocation0]]
  $region57: #{tpu_custom_call.1} parent=0
    _
  %s7 = ssub.s32 1, %s5
  %s8 = scalar_select 0, %s7, %s5
  $region1: #{tpu_custom_call.1} parent=0
    #allocation2 [shape = 'u8[131072]{0}', space=vmem, size = 0x20000, scoped, tag = 'input window, operand 0']
    #allocation3 [shape = 's32[2]{0}', space=sflag, size = 0x8, scoped, tag = 'scoped memory for tpu_custom_call.1']
    #allocation4 [shape = 's32[2]{0}', space=sflag, size = 0x8, scoped, tag = 'scoped memory for tpu_custom_call.1']
    #allocation5 [shape = 'u8[98304]{0}', space=vmem, size = 0x18000, scoped, tag = 'input window, operand 3, single buffered']
    #allocation6 [shape = 's32[1]{0}', space=sflag, size = 0x4, scoped, tag = 'scoped memory for tpu_custom_call.1']
    #allocation7 [shape = 'u8[196608]{0}', space=vmem, size = 0x30000, scoped, tag = 'output window, operand 0']
    %9 = vsyncpa [#allocation3], 0
    %s10 = scalar_lea.sflag [#allocation3], 1
    %11 = vsyncpa %s10, 0
    %12 = vsyncpa [#allocation6], 0
    %13 = vsyncpa [#allocation4], 0
    %s14 = scalar_lea.sflag [#allocation4], 1
    %15 = vsyncpa %s14, 0
    loop: start=0, step=1, limit=6
    $region2: #{tpu_custom_call.1} parent=1 // loop_pre_header
      _
    $region3: #{tpu_custom_call.1} parent=1 // loop_header
      %s17 = sphi 0, %s21
      %p18 = scmp.ge.s32.totalorder %s17, 6
      %s24 = sphi 0, %s36
      %s25 = sphi 0, %s32
      %s26 = sphi 0, %s24
      %s27 = sphi 0, %s25
      %s28 = sphi 0, %s26
      %s29 = sphi 0, %s27
      %s41 = sphi 0, %s43
      %s44 = sphi 0, %s41
      %s45 = sphi 0, %s44
      %s61 = sphi 0, %s45
      %s65 = sphi 0, %s65
      %s67 = sphi 0, %s65
      %s68 = sphi 0, %s67
      %s82 = sphi 0, %s68
      %s86 = sphi 0, %s86
      %s88 = sphi 0, %s86
      %s89 = sphi 0, %s88
      %s103 = sphi 0, %s89
      %s107 = sphi 0, %s107
      %s109 = sphi 0, %s107
      %s110 = sphi 0, %s109
      %s124 = sphi 0, %s110
      %s132 = sphi 0, %s134
      %s135 = sphi 0, %s132
      %s136 = sphi 0, %s135
      %s152 = sphi 0, %s136
    $region4: #{tpu_custom_call.1} parent=1 // loop_header_branch
      %20 = sbr.rel (%p18) target = $region8
    $region5: #{tpu_custom_call.1} parent=1 // loop_body
      %s22 = ssub.s32 %s17, 1
      %s23 = ssub.s32 %s17, 2
      %s30 = sadd.s32 1, %s25
      %p31 = scmp.ge.s32.totalorder %s30, 2
      %s32 = scalar_select %p31, 0, %s30
      %s33 = sadd.s32 1, %s24
      %s34 = scalar_select %p31, %s33, %s24
      %p35 = scmp.ge.s32.totalorder %s34, 2
      %s36 = scalar_select %p35, 0, %s34
      %s37 = ssub.s32 %s24, %s36
      %s38 = ssub.s32 %s25, %s32
      %s39 = sor.u32 %s37, %s38
      %p40 = scmp.eq.s32.totalorder %s39, 0
      %s42 = sadd.s32 %s41, 1
      %s43 = scalar_select %p40, %s41, %s42
      %p46 = pneg %p40
      %p47 = scmp.eq.s32.totalorder %s17, 3
      %p48 = por %p46, %p47
      %p49 = scmp.ne.s32.totalorder %s41, %s44
      %p50 = scmp.eq.s32.totalorder %s17, 0
      %p51 = por %p49, %p50
      %p52 = scmp.ne.s32.totalorder %s41, %s44
      %p53 = scmp.eq.s32.totalorder %s22, 3
      %p54 = por %p52, %p53
      %p55 = scmp.ne.s32.totalorder %s44, %s45
      %p56 = scmp.eq.s32.totalorder %s22, 0
      %p57 = por %p55, %p56
      %p58 = scmp.ne.s32.totalorder %s44, %s45
      %p59 = scmp.eq.s32.totalorder %s23, 3
      %p60 = por %p58, %p59
      %p62 = scmp.ne.s32.totalorder %s45, %s61
      %p63 = scmp.eq.s32.totalorder %s23, 0
      %p64 = por %p62, %p63
      %s66 = sadd.s32 %s65, 1
      %p69 = scmp.eq.s32.totalorder %s17, 3
      %p70 = scmp.ne.s32.totalorder %s65, %s67
      %p71 = scmp.eq.s32.totalorder %s17, 0
      %p72 = por %p70, %p71
      %p73 = scmp.ne.s32.totalorder %s65, %s67
      %p74 = scmp.eq.s32.totalorder %s22, 3
      %p75 = por %p73, %p74
      %p76 = scmp.ne.s32.totalorder %s67, %s68
      %p77 = scmp.eq.s32.totalorder %s22, 0
      %p78 = por %p76, %p77
      %p79 = scmp.ne.s32.totalorder %s67, %s68
      %p80 = scmp.eq.s32.totalorder %s23, 3
      %p81 = por %p79, %p80
      %p83 = scmp.ne.s32.totalorder %s68, %s82
      %p84 = scmp.eq.s32.totalorder %s23, 0
      %p85 = por %p83, %p84
      %s87 = sadd.s32 %s86, 1
      %p90 = scmp.eq.s32.totalorder %s17, 3
      %p91 = scmp.ne.s32.totalorder %s86, %s88
      %p92 = scmp.eq.s32.totalorder %s17, 0
      %p93 = por %p91, %p92
      %p94 = scmp.ne.s32.totalorder %s86, %s88
      %p95 = scmp.eq.s32.totalorder %s22, 3
      %p96 = por %p94, %p95
      %p97 = scmp.ne.s32.totalorder %s88, %s89
      %p98 = scmp.eq.s32.totalorder %s22, 0
      %p99 = por %p97, %p98
      %p100 = scmp.ne.s32.totalorder %s88, %s89
      %p101 = scmp.eq.s32.totalorder %s23, 3
      %p102 = por %p100, %p101
      %p104 = scmp.ne.s32.totalorder %s89, %s103
      %p105 = scmp.eq.s32.totalorder %s23, 0
      %p106 = por %p104, %p105
      %s108 = sadd.s32 %s107, 1
      %p111 = scmp.eq.s32.totalorder %s17, 3
      %p112 = scmp.ne.s32.totalorder %s107, %s109
      %p113 = scmp.eq.s32.totalorder %s17, 0
      %p114 = por %p112, %p113
      %p115 = scmp.ne.s32.totalorder %s107, %s109
      %p116 = scmp.eq.s32.totalorder %s22, 3
      %p117 = por %p115, %p116
      %p118 = scmp.ne.s32.totalorder %s109, %s110
      %p119 = scmp.eq.s32.totalorder %s22, 0
      %p120 = por %p118, %p119
      %p121 = scmp.ne.s32.totalorder %s109, %s110
      %p122 = scmp.eq.s32.totalorder %s23, 3
      %p123 = por %p121, %p122
      %p125 = scmp.ne.s32.totalorder %s110, %s124
      %p126 = scmp.eq.s32.totalorder %s23, 0
      %p127 = por %p125, %p126
      %s128 = ssub.s32 %s24, %s36
      %s129 = ssub.s32 %s25, %s32
      %s130 = sor.u32 %s128, %s129
      %p131 = scmp.eq.s32.totalorder %s130, 0
      %s133 = sadd.s32 %s132, 1
      %s134 = scalar_select %p131, %s132, %s133
      %p137 = pneg %p131
      %p138 = scmp.eq.s32.totalorder %s17, 3
      %p139 = por %p137, %p138
      %p140 = scmp.ne.s32.totalorder %s132, %s135
      %p141 = scmp.eq.s32.totalorder %s17, 0
      %p142 = por %p140, %p141
      %p143 = scmp.ne.s32.totalorder %s132, %s135
      %p144 = scmp.eq.s32.totalorder %s22, 3
      %p145 = por %p143, %p144
      %p146 = scmp.ne.s32.totalorder %s135, %s136
      %p147 = scmp.eq.s32.totalorder %s22, 0
      %p148 = por %p146, %p147
      %p149 = scmp.ne.s32.totalorder %s135, %s136
      %p150 = scmp.eq.s32.totalorder %s23, 3
      %p151 = por %p149, %p150
      %p153 = scmp.ne.s32.totalorder %s136, %s152
      %p154 = scmp.eq.s32.totalorder %s23, 0
      %p155 = por %p153, %p154
      %p156 = scmp.le.s32.totalorder 1, %s17
      %p157 = scmp.lt.s32.totalorder %s17, 5
      %p158 = pnand %p156, %p157
      %p159 = pneg %p158
      // Predicated region
      $region9: #{tpu_custom_call.1} parent=5 // pred_check
        _
      $region10: #{tpu_custom_call.1} parent=5 // pred_check_branch
        %161 = sbr.rel (%p158) target = $region12
      $region11: #{tpu_custom_call.1} parent=5 // pred_region
        %s162 = ssub.s32 %s17, 1
        // Predicated region
        $region13: #{tpu_custom_call.1} parent=11 // pred_check
          %p163 = pneg %p78
        $region14: #{tpu_custom_call.1} parent=11 // pred_check_branch
          %165 = sbr.rel (%p163) target = $region16
        $region15: #{tpu_custom_call.1} parent=11 // pred_region
          _
        $region16: #{tpu_custom_call.1} parent=11 // pred_fallthru
          _
        // Predicated region
        $region17: #{tpu_custom_call.1} parent=11 // pred_check
          %p166 = pneg %p99
        $region18: #{tpu_custom_call.1} parent=11 // pred_check_branch
          %168 = sbr.rel (%p166) target = $region20
        $region19: #{tpu_custom_call.1} parent=11 // pred_region
          _
        $region20: #{tpu_custom_call.1} parent=11 // pred_fallthru
          _
        // Predicated region
        $region21: #{tpu_custom_call.1} parent=11 // pred_check
          %p169 = pneg %p120
        $region22: #{tpu_custom_call.1} parent=11 // pred_check_branch
          %171 = sbr.rel (%p169) target = $region24
        $region23: #{tpu_custom_call.1} parent=11 // pred_region
          %s173 = ssub.s32 3072, 3072
          %174 = vsyncadd [#allocation6], %s173
          %s175 = sshll.u32 [#allocation5], 4
          %s176 = int_to_ptr.vmem [resolvable:$true] %s175
          %181 = dma.hbm_to_vmem [thread:$0]  %s3, 3072, %s176, [#allocation6], 192, 192, 12
        $region24: #{tpu_custom_call.1} parent=11 // pred_fallthru
          _
      $region12: #{tpu_custom_call.1} parent=5 // pred_fallthru
        _
      %p182 = scmp.lt.s32.totalorder %s17, 4
      // Predicated region
      $region25: #{tpu_custom_call.1} parent=5 // pred_check
        %p183 = pneg %p182
      $region26: #{tpu_custom_call.1} parent=5 // pred_check_branch
        %185 = sbr.rel (%p183) target = $region28
      $region27: #{tpu_custom_call.1} parent=5 // pred_region
        // Predicated region
        $region29: #{tpu_custom_call.1} parent=27 // pred_check
          %p186 = pneg %p51
        $region30: #{tpu_custom_call.1} parent=27 // pred_check_branch
          %188 = sbr.rel (%p186) target = $region32
        $region31: #{tpu_custom_call.1} parent=27 // pred_region
          %s189 = sand.u32 %s41, 1
          %s190 = scalar_lea.sflag [#allocation3], %s189
          %s191 = sand.u32 %s41, 1
          %s192 = smul.addr %s191, 128
          %s193 = scalar_lea.vmem [#allocation2], %s192
          %s194 = smul.u32 16, %s25
          %s196 = ssub.s32 2048, 2048
          %197 = vsyncadd %s190, %s196
          %s198 = smul.addr %s24, 32
          %s199 = sadd.s32 %s194, %s198
          %s200 = smul.addr %s199, 128
          %s201 = scalar_lea.hbm %s0, %s200
          %s202 = sshll.u32 %s193, 4
          %s203 = int_to_ptr.vmem [resolvable:$true] %s202
          %208 = dma.hbm_to_vmem [thread:$0]  %s201, 2048, %s203, %s190, 128, 128, 8
        $region32: #{tpu_custom_call.1} parent=27 // pred_fallthru
          _
      $region28: #{tpu_custom_call.1} parent=5 // pred_fallthru
        _
      %p209 = scmp.le.s32.totalorder 1, %s17
      %p210 = scmp.lt.s32.totalorder %s17, 5
      %p211 = pnand %p209, %p210
      %p212 = pneg %p211
      // Predicated region
      $region33: #{tpu_custom_call.1} parent=5 // pred_check
        _
      $region34: #{tpu_custom_call.1} parent=5 // pred_check_branch
        %214 = sbr.rel (%p211) target = $region36
      $region35: #{tpu_custom_call.1} parent=5 // pred_region
        %s215 = ssub.s32 %s17, 1
        %s216 = sand.u32 %s44, 1
        %s217 = scalar_lea.sflag [#allocation3], %s216
        %s218 = sand.u32 %s44, 1
        %s219 = smul.addr %s218, 128
        %s220 = scalar_lea.vmem [#allocation2], %s219
        // Predicated region
        $region37: #{tpu_custom_call.1} parent=35 // pred_check
          %p221 = pneg %p57
        $region38: #{tpu_custom_call.1} parent=35 // pred_check_branch
          %223 = sbr.rel (%p221) target = $region40
        $region39: #{tpu_custom_call.1} parent=35 // pred_region
          %224 = dma.done %s217, 2048
        $region40: #{tpu_custom_call.1} parent=35 // pred_fallthru
          _
        // Predicated region
        $region41: #{tpu_custom_call.1} parent=35 // pred_check
          %p225 = pneg %p120
        $region42: #{tpu_custom_call.1} parent=35 // pred_check_branch
          %227 = sbr.rel (%p225) target = $region44
        $region43: #{tpu_custom_call.1} parent=35 // pred_region
          %228 = dma.done [#allocation6], 3072
        $region44: #{tpu_custom_call.1} parent=35 // pred_fallthru
          _
        %s229 = sand.u32 %s44, 1
        %s230 = scalar_lea.sflag [#allocation3], %s229
        %s231 = sand.u32 %s44, 1
        %s232 = smul.addr %s231, 128
        %s233 = scalar_lea.vmem [#allocation2], %s232
        %p234 = pneg %p57
        %p235 = pneg %p54
        %p236 = pneg %p78
        %p237 = pneg %p75
        %p238 = pneg %p99
        %p239 = pneg %p96
        %p240 = pneg %p120
        %p241 = pneg %p117
        %p242 = pneg %p148
        %p243 = pneg %p145
        %s244 = sand.u32 %s135, 1
        %s245 = scalar_lea.sflag [#allocation4], %s244
        %s246 = sand.u32 %s135, 1
        %s247 = smul.addr %s246, 192
        %s248 = scalar_lea.vmem [#allocation7], %s247
        %s249 = smul.u32 16, %s27
        %s250 = smul.u32 16, %s27
        %v252 = vld [vmem:[%s220] sm:$0xff]
        %v253 = vld [vmem:[%s220 + $0x8] sm:$0xff]
        %v254 = vld [vmem:[%s220 + $0x10] sm:$0xff]
        %v255 = vld [vmem:[%s220 + $0x18] sm:$0xff]
        %v256 = vld [vmem:[%s220 + $0x20] sm:$0xff]
        %v257 = vld [vmem:[%s220 + $0x28] sm:$0xff]
        %v258 = vld [vmem:[%s220 + $0x30] sm:$0xff]
        %v259 = vld [vmem:[%s220 + $0x38] sm:$0xff]
        %v260 = vld [vmem:[%s220 + $0x40] sm:$0xff]
        %v261 = vld [vmem:[%s220 + $0x48] sm:$0xff]
        %v262 = vld [vmem:[%s220 + $0x50] sm:$0xff]
        %v263 = vld [vmem:[%s220 + $0x58] sm:$0xff]
        %v264 = vld [vmem:[%s220 + $0x60] sm:$0xff]
        %v265 = vld [vmem:[%s220 + $0x68] sm:$0xff]
        %v266 = vld [vmem:[%s220 + $0x70] sm:$0xff]
        %v267 = vld [vmem:[%s220 + $0x78] sm:$0xff]
        %268 = vadd.xlane.f32.xlu0 %v252
        %v269 = vpop.xlane.xlu0 %268
        %270 = vadd.xlane.f32.xlu0 %v253
        %v271 = vpop.xlane.xlu0 %270
        %272 = vadd.xlane.f32.xlu0 %v254
        %v273 = vpop.xlane.xlu0 %272
        %274 = vadd.xlane.f32.xlu0 %v255
        %v275 = vpop.xlane.xlu0 %274
        %276 = vadd.xlane.f32.xlu0 %v256
        %v277 = vpop.xlane.xlu0 %276
        %278 = vadd.xlane.f32.xlu0 %v257
        %v279 = vpop.xlane.xlu0 %278
        %280 = vadd.xlane.f32.xlu0 %v258
        %v281 = vpop.xlane.xlu0 %280
        %282 = vadd.xlane.f32.xlu0 %v259
        %v283 = vpop.xlane.xlu0 %282
        %284 = vadd.xlane.f32.xlu0 %v260
        %v285 = vpop.xlane.xlu0 %284
        %286 = vadd.xlane.f32.xlu0 %v261
        %v287 = vpop.xlane.xlu0 %286
        %288 = vadd.xlane.f32.xlu0 %v262
        %v289 = vpop.xlane.xlu0 %288
        %290 = vadd.xlane.f32.xlu0 %v263
        %v291 = vpop.xlane.xlu0 %290
        %292 = vadd.xlane.f32.xlu0 %v264
        %v293 = vpop.xlane.xlu0 %292
        %294 = vadd.xlane.f32.xlu0 %v265
        %v295 = vpop.xlane.xlu0 %294
        %296 = vadd.xlane.f32.xlu0 %v266
        %v297 = vpop.xlane.xlu0 %296
        %298 = vadd.xlane.f32.xlu0 %v267
        %v299 = vpop.xlane.xlu0 %298
        %v300 = vrcp.pop 128.0
        %v301 = vmul.f32 %v269, %v300
        %v302 = vmul.f32 %v271, %v300
        %v303 = vmul.f32 %v273, %v300
        %v304 = vmul.f32 %v275, %v300
        %v305 = vmul.f32 %v277, %v300
        %v306 = vmul.f32 %v279, %v300
        %v307 = vmul.f32 %v281, %v300
        %v308 = vmul.f32 %v283, %v300
        %v309 = vmul.f32 %v285, %v300
        %v310 = vmul.f32 %v287, %v300
        %v311 = vmul.f32 %v289, %v300
        %v312 = vmul.f32 %v291, %v300
        %v313 = vmul.f32 %v293, %v300
        %v314 = vmul.f32 %v295, %v300
        %v315 = vmul.f32 %v297, %v300
        %v316 = vmul.f32 %v299, %v300
        %v317 = vsub.f32 %v252, %v301
        %v318 = vsub.f32 %v253, %v302
        %v319 = vsub.f32 %v254, %v303
        %v320 = vsub.f32 %v255, %v304
        %v321 = vsub.f32 %v256, %v305
        %v322 = vsub.f32 %v257, %v306
        %v323 = vsub.f32 %v258, %v307
        %v324 = vsub.f32 %v259, %v308
        %v325 = vsub.f32 %v260, %v309
        %v326 = vsub.f32 %v261, %v310
        %v327 = vsub.f32 %v262, %v311
        %v328 = vsub.f32 %v263, %v312
        %v329 = vsub.f32 %v264, %v313
        %v330 = vsub.f32 %v265, %v314
        %v331 = vsub.f32 %v266, %v315
        %v332 = vsub.f32 %v267, %v316
        %v333 = vmul.f32 %v317, %v317
        %v334 = vmul.f32 %v318, %v318
        %v335 = vmul.f32 %v319, %v319
        %v336 = vmul.f32 %v320, %v320
        %v337 = vmul.f32 %v321, %v321
        %v338 = vmul.f32 %v322, %v322
        %v339 = vmul.f32 %v323, %v323
        %v340 = vmul.f32 %v324, %v324
        %v341 = vmul.f32 %v325, %v325
        %v342 = vmul.f32 %v326, %v326
        %v343 = vmul.f32 %v327, %v327
        %v344 = vmul.f32 %v328, %v328
        %v345 = vmul.f32 %v329, %v329
        %v346 = vmul.f32 %v330, %v330
        %v347 = vmul.f32 %v331, %v331
        %v348 = vmul.f32 %v332, %v332
        %349 = vadd.xlane.f32.xlu0 %v333
        %v350 = vpop.xlane.xlu0 %349
        %351 = vadd.xlane.f32.xlu0 %v334
        %v352 = vpop.xlane.xlu0 %351
        %353 = vadd.xlane.f32.xlu0 %v335
        %v354 = vpop.xlane.xlu0 %353
        %355 = vadd.xlane.f32.xlu0 %v336
        %v356 = vpop.xlane.xlu0 %355
        %357 = vadd.xlane.f32.xlu0 %v337
        %v358 = vpop.xlane.xlu0 %357
        %359 = vadd.xlane.f32.xlu0 %v338
        %v360 = vpop.xlane.xlu0 %359
        %361 = vadd.xlane.f32.xlu0 %v339
        %v362 = vpop.xlane.xlu0 %361
        %363 = vadd.xlane.f32.xlu0 %v340
        %v364 = vpop.xlane.xlu0 %363
        %365 = vadd.xlane.f32.xlu0 %v341
        %v366 = vpop.xlane.xlu0 %365
        %367 = vadd.xlane.f32.xlu0 %v342
        %v368 = vpop.xlane.xlu0 %367
        %369 = vadd.xlane.f32.xlu0 %v343
        %v370 = vpop.xlane.xlu0 %369
        %371 = vadd.xlane.f32.xlu0 %v344
        %v372 = vpop.xlane.xlu0 %371
        %373 = vadd.xlane.f32.xlu0 %v345
        %v374 = vpop.xlane.xlu0 %373
        %375 = vadd.xlane.f32.xlu0 %v346
        %v376 = vpop.xlane.xlu0 %375
        %377 = vadd.xlane.f32.xlu0 %v347
        %v378 = vpop.xlane.xlu0 %377
        %379 = vadd.xlane.f32.xlu0 %v348
        %v380 = vpop.xlane.xlu0 %379
        %v381 = vmul.f32 %v350, %v300
        %v382 = vmul.f32 %v352, %v300
        %v383 = vmul.f32 %v354, %v300
        %v384 = vmul.f32 %v356, %v300
        %v385 = vmul.f32 %v358, %v300
        %v386 = vmul.f32 %v360, %v300
        %v387 = vmul.f32 %v362, %v300
        %v388 = vmul.f32 %v364, %v300
        %v389 = vmul.f32 %v366, %v300
        %v390 = vmul.f32 %v368, %v300
        %v391 = vmul.f32 %v370, %v300
        %v392 = vmul.f32 %v372, %v300
        %v393 = vmul.f32 %v374, %v300
        %v394 = vmul.f32 %v376, %v300
        %v395 = vmul.f32 %v378, %v300
        %v396 = vmul.f32 %v380, %v300
        %v397 = vadd.f32 %v381, 1e-05
        %v398 = vadd.f32 %v382, 1e-05
        %v399 = vadd.f32 %v383, 1e-05
        %v400 = vadd.f32 %v384, 1e-05
        %v401 = vadd.f32 %v385, 1e-05
        %v402 = vadd.f32 %v386, 1e-05
        %v403 = vadd.f32 %v387, 1e-05
        %v404 = vadd.f32 %v388, 1e-05
        %v405 = vadd.f32 %v389, 1e-05
        %v406 = vadd.f32 %v390, 1e-05
        %v407 = vadd.f32 %v391, 1e-05
        %v408 = vadd.f32 %v392, 1e-05
        %v409 = vadd.f32 %v393, 1e-05
        %v410 = vadd.f32 %v394, 1e-05
        %v411 = vadd.f32 %v395, 1e-05
        %v412 = vadd.f32 %v396, 1e-05
        %v413 = vrsqrt.pop %v397
        %v414 = vrsqrt.pop %v398
        %v415 = vrsqrt.pop %v399
        %v416 = vrsqrt.pop %v400
        %v417 = vrsqrt.pop %v401
        %v418 = vrsqrt.pop %v402
        %v419 = vrsqrt.pop %v403
        %v420 = vrsqrt.pop %v404
        %v421 = vrsqrt.pop %v405
        %v422 = vrsqrt.pop %v406
        %v423 = vrsqrt.pop %v407
        %v424 = vrsqrt.pop %v408
        %v425 = vrsqrt.pop %v409
        %v426 = vrsqrt.pop %v410
        %v427 = vrsqrt.pop %v411
        %v428 = vrsqrt.pop %v412
        %v429 = vmul.f32 %v317, %v413
        %v430 = vmul.f32 %v318, %v414
        %v431 = vmul.f32 %v319, %v415
        %v432 = vmul.f32 %v320, %v416
        %v433 = vmul.f32 %v321, %v417
        %v434 = vmul.f32 %v322, %v418
        %v435 = vmul.f32 %v323, %v419
        %v436 = vmul.f32 %v324, %v420
        %v437 = vmul.f32 %v325, %v421
        %v438 = vmul.f32 %v326, %v422
        %v439 = vmul.f32 %v327, %v423
        %v440 = vmul.f32 %v328, %v424
        %v441 = vmul.f32 %v329, %v425
        %v442 = vmul.f32 %v330, %v426
        %v443 = vmul.f32 %v331, %v427
        %v444 = vmul.f32 %v332, %v428
        %v445 = vld [vmem:[%s1] sm:$0x1]
        %v447 = vlaneseq
        %v448 = vshrl.u32 %v447, 7
        %v449 = vsub.s32 0, %v448
        %v450 = vrot.slane %v445, %v449
        %v452 = vmul.f32 %v429, %v450
        %v453 = vmul.f32 %v430, %v450
        %v454 = vmul.f32 %v431, %v450
        %v455 = vmul.f32 %v432, %v450
        %v456 = vmul.f32 %v433, %v450
        %v457 = vmul.f32 %v434, %v450
        %v458 = vmul.f32 %v435, %v450
        %v459 = vmul.f32 %v436, %v450
        %v460 = vmul.f32 %v437, %v450
        %v461 = vmul.f32 %v438, %v450
        %v462 = vmul.f32 %v439, %v450
        %v463 = vmul.f32 %v440, %v450
        %v464 = vmul.f32 %v441, %v450
        %v465 = vmul.f32 %v442, %v450
        %v466 = vmul.f32 %v443, %v450
        %v467 = vmul.f32 %v444, %v450
        %v468 = vld [vmem:[%s2] sm:$0x1]
        %v470 = vlaneseq
        %v471 = vshrl.u32 %v470, 7
        %v472 = vsub.s32 0, %v471
        %v473 = vrot.slane %v468, %v472
        %v475 = vadd.f32 %v452, %v473
        %v476 = vadd.f32 %v453, %v473
        %v477 = vadd.f32 %v454, %v473
        %v478 = vadd.f32 %v455, %v473
        %v479 = vadd.f32 %v456, %v473
        %v480 = vadd.f32 %v457, %v473
        %v481 = vadd.f32 %v458, %v473
        %v482 = vadd.f32 %v459, %v473
        %v483 = vadd.f32 %v460, %v473
        %v484 = vadd.f32 %v461, %v473
        %v485 = vadd.f32 %v462, %v473
        %v486 = vadd.f32 %v463, %v473
        %v487 = vadd.f32 %v464, %v473
        %v488 = vadd.f32 %v465, %v473
        %v489 = vadd.f32 %v466, %v473
        %v490 = vadd.f32 %v467, %v473
        %v491 = vpack.c.bf16 %v476, %v475
        %v492 = vpack.c.bf16 %v478, %v477
        %v493 = vpack.c.bf16 %v480, %v479
        %v494 = vpack.c.bf16 %v482, %v481
        %v495 = vpack.c.bf16 %v484, %v483
        %v496 = vpack.c.bf16 %v486, %v485
        %v497 = vpack.c.bf16 %v488, %v487
        %v498 = vpack.c.bf16 %v490, %v489
        %v499 = vld [vmem:[#allocation5] sm:$0xff]
        %v500 = vld [vmem:[#allocation5 + $0x8] sm:$0xf]
        %v501 = vld [vmem:[#allocation5 + $0xc] sm:$0xff]
        %v502 = vld [vmem:[#allocation5 + $0x14] sm:$0xf]
        %v503 = vld [vmem:[#allocation5 + $0x18] sm:$0xff]
        %v504 = vld [vmem:[#allocation5 + $0x20] sm:$0xf]
        %v505 = vld [vmem:[#allocation5 + $0x24] sm:$0xff]
        %v506 = vld [vmem:[#allocation5 + $0x2c] sm:$0xf]
        %v507 = vld [vmem:[#allocation5 + $0x30] sm:$0xff]
        %v508 = vld [vmem:[#allocation5 + $0x38] sm:$0xf]
        %v509 = vld [vmem:[#allocation5 + $0x3c] sm:$0xff]
        %v510 = vld [vmem:[#allocation5 + $0x44] sm:$0xf]
        %v511 = vld [vmem:[#allocation5 + $0x48] sm:$0xff]
        %v512 = vld [vmem:[#allocation5 + $0x50] sm:$0xf]
        %v513 = vld [vmem:[#allocation5 + $0x54] sm:$0xff]
        %v514 = vld [vmem:[#allocation5 + $0x5c] sm:$0xf]
        %v515 = vld [vmem:[#allocation5 + $0x60] sm:$0xff]
        %v516 = vld [vmem:[#allocation5 + $0x68] sm:$0xf]
        %v517 = vld [vmem:[#allocation5 + $0x6c] sm:$0xff]
        %v518 = vld [vmem:[#allocation5 + $0x74] sm:$0xf]
        %v519 = vld [vmem:[#allocation5 + $0x78] sm:$0xff]
        %v520 = vld [vmem:[#allocation5 + $0x80] sm:$0xf]
        %v521 = vld [vmem:[#allocation5 + $0x84] sm:$0xff]
        %v522 = vld [vmem:[#allocation5 + $0x8c] sm:$0xf]
        %v523 = vld [vmem:[#allocation5 + $0x90] sm:$0xff]
        %v524 = vld [vmem:[#allocation5 + $0x98] sm:$0xf]
        %v525 = vld [vmem:[#allocation5 + $0x9c] sm:$0xff]
        %v526 = vld [vmem:[#allocation5 + $0xa4] sm:$0xf]
        %v527 = vld [vmem:[#allocation5 + $0xa8] sm:$0xff]
        %v528 = vld [vmem:[#allocation5 + $0xb0] sm:$0xf]
        %v529 = vld [vmem:[#allocation5 + $0xb4] sm:$0xff]
        %v530 = vld [vmem:[#allocation5 + $0xbc] sm:$0xf]
        %v563 = vunpack.c.l.b16 %v499
        %v564 = vunpack.c.h.b16 %v499
        %v565 = vunpack.c.l.b16 %v500
        %v566 = vunpack.c.l.b16 %v501
        %v567 = vunpack.c.h.b16 %v501
        %v568 = vunpack.c.l.b16 %v502
        %v569 = vunpack.c.l.b16 %v503
        %v570 = vunpack.c.h.b16 %v503
        %v571 = vunpack.c.l.b16 %v504
        %v572 = vunpack.c.l.b16 %v505
        %v573 = vunpack.c.h.b16 %v505
        %v574 = vunpack.c.l.b16 %v506
        %v575 = vunpack.c.l.b16 %v507
        %v576 = vunpack.c.h.b16 %v507
        %v577 = vunpack.c.l.b16 %v508
        %v578 = vunpack.c.l.b16 %v509
        %v579 = vunpack.c.h.b16 %v509
        %v580 = vunpack.c.l.b16 %v510
        %v581 = vunpack.c.l.b16 %v511
        %v582 = vunpack.c.h.b16 %v511
        %v583 = vunpack.c.l.b16 %v512
        %v584 = vunpack.c.l.b16 %v513
        %v585 = vunpack.c.h.b16 %v513
        %v586 = vunpack.c.l.b16 %v514
        %v587 = vunpack.c.l.b16 %v515
        %v588 = vunpack.c.h.b16 %v515
        %v589 = vunpack.c.l.b16 %v516
        %v590 = vunpack.c.l.b16 %v517
        %v591 = vunpack.c.h.b16 %v517
        %v592 = vunpack.c.l.b16 %v518
        %v593 = vunpack.c.l.b16 %v519
        %v594 = vunpack.c.h.b16 %v519
        %v595 = vunpack.c.l.b16 %v520
        %v596 = vunpack.c.l.b16 %v521
        %v597 = vunpack.c.h.b16 %v521
        %v598 = vunpack.c.l.b16 %v522
        %v599 = vunpack.c.l.b16 %v523
        %v600 = vunpack.c.h.b16 %v523
        %v601 = vunpack.c.l.b16 %v524
        %v602 = vunpack.c.l.b16 %v525
        %v603 = vunpack.c.h.b16 %v525
        %v604 = vunpack.c.l.b16 %v526
        %v605 = vunpack.c.l.b16 %v527
        %v606 = vunpack.c.h.b16 %v527
        %v607 = vunpack.c.l.b16 %v528
        %v608 = vunpack.c.l.b16 %v529
        %v609 = vunpack.c.h.b16 %v529
        %v610 = vunpack.c.l.b16 %v530
        %v611 = vpack.c.b16 %v566, %v563
        %v612 = vpack.c.b16 %v567, %v564
        %v613 = vpack.c.b16 %v568, %v565
        %v614 = vpack.c.b16 %v572, %v569
        %v615 = vpack.c.b16 %v573, %v570
        %v616 = vpack.c.b16 %v574, %v571
        %v617 = vpack.c.b16 %v578, %v575
        %v618 = vpack.c.b16 %v579, %v576
        %v619 = vpack.c.b16 %v580, %v577
        %v620 = vpack.c.b16 %v584, %v581
        %v621 = vpack.c.b16 %v585, %v582
        %v622 = vpack.c.b16 %v586, %v583
        %v623 = vpack.c.b16 %v590, %v587
        %v624 = vpack.c.b16 %v591, %v588
        %v625 = vpack.c.b16 %v592, %v589
        %v626 = vpack.c.b16 %v596, %v593
        %v627 = vpack.c.b16 %v597, %v594
        %v628 = vpack.c.b16 %v598, %v595
        %v629 = vpack.c.b16 %v602, %v599
        %v630 = vpack.c.b16 %v603, %v600
        %v631 = vpack.c.b16 %v604, %v601
        %v632 = vpack.c.b16 %v608, %v605
        %v633 = vpack.c.b16 %v609, %v606
        %v634 = vpack.c.b16 %v610, %v607
        %659 = vmatprep.subr.bf16.mxu0 %v633
        %660 = vmatpush1.bf16.msra.mxu0 %v632
        %661 = vmatprep.subr.bf16.mxu0 %v630
        %662 = vmatpush1.bf16.msra.mxu0 %v629
        %663 = vmatprep.subr.bf16.mxu0 %v627
        %664 = vmatpush1.bf16.msra.mxu0 %v626
        %665 = vmatprep.subr.bf16.mxu0 %v624
        %666 = vmatpush1.bf16.msra.mxu0 %v623
        %667 = vmatprep.subr.bf16.mxu0 %v621
        %668 = vmatpush1.bf16.msra.mxu0 %v620
        %669 = vmatprep.subr.bf16.mxu0 %v618
        %670 = vmatpush1.bf16.msra.mxu0 %v617
        %671 = vmatprep.subr.bf16.mxu0 %v615
        %672 = vmatpush1.bf16.msra.mxu0 %v614
        %673 = vmatprep.subr.bf16.mxu0 %v612
        %674 = vmatpush1.bf16.msra.mxu0 %v611
        %675 = vmatprep.subr.bf16.mxu0 0
        %676 = vmatpush2.bf16.msra.mxu0 0
        %677 = vmatprep.subr.bf16.mxu0 0
        %678 = vmatpush2.bf16.msra.mxu0 0
        %679 = vmatprep.subr.bf16.mxu0 0
        %680 = vmatpush2.bf16.msra.mxu0 0
        %681 = vmatprep.subr.bf16.mxu0 0
        %682 = vmatpush2.bf16.msra.mxu0 0
        %683 = vmatprep.subr.bf16.mxu0 0
        %684 = vmatpush2.bf16.msra.mxu0 0
        %685 = vmatprep.subr.bf16.mxu0 0
        %686 = vmatpush2.bf16.msra.mxu0 0
        %687 = vmatprep.subr.bf16.mxu0 0
        %688 = vmatpush2.bf16.msra.mxu0 0
        %689 = vmatprep.subr.bf16.mxu0 0
        %690 = vmatpush2.bf16.msra.mxu0 0
        %691 = vmatprep.mubr.bf16.mxu0 0
        %692 = vmatmul.mubr.bf16.gmra.mxu0 %v491
        %v693 = vpop.f32.mrf.mxu0
        %v694 = vadd.f32 0.0, %v693
        %v695 = vpop.f32.mrf.mxu0
        %v696 = vadd.f32 0.0, %v695
        %v697 = vpop.f32.mrf.mxu0
        %v698 = vadd.f32 0.0, %v697
        %v699 = vpop.f32.mrf.mxu0
        %v700 = vadd.f32 0.0, %v699
        %701 = vmatprep.mubr.bf16.mxu0 0
        %702 = vmatmul.mubr.bf16.gmra.mxu0 %v492
        %v703 = vpop.f32.mrf.mxu0
        %v704 = vadd.f32 0.0, %v703
        %v705 = vpop.f32.mrf.mxu0
        %v706 = vadd.f32 0.0, %v705
        %v707 = vpop.f32.mrf.mxu0
        %v708 = vadd.f32 0.0, %v707
        %v709 = vpop.f32.mrf.mxu0
        %v710 = vadd.f32 0.0, %v709
        %711 = vmatprep.mubr.bf16.mxu0 0
        %712 = vmatmul.mubr.bf16.gmra.mxu0 %v493
        %v713 = vpop.f32.mrf.mxu0
        %v714 = vadd.f32 0.0, %v713
        %v715 = vpop.f32.mrf.mxu0
        %v716 = vadd.f32 0.0, %v715
        %v717 = vpop.f32.mrf.mxu0
        %v718 = vadd.f32 0.0, %v717
        %v719 = vpop.f32.mrf.mxu0
        %v720 = vadd.f32 0.0, %v719
        %721 = vmatprep.mubr.bf16.mxu0 0
        %722 = vmatmul.mubr.bf16.gmra.mxu0 %v494
        %v723 = vpop.f32.mrf.mxu0
        %v724 = vadd.f32 0.0, %v723
        %v725 = vpop.f32.mrf.mxu0
        %v726 = vadd.f32 0.0, %v725
        %v727 = vpop.f32.mrf.mxu0
        %v728 = vadd.f32 0.0, %v727
        %v729 = vpop.f32.mrf.mxu0
        %v730 = vadd.f32 0.0, %v729
        %731 = vmatprep.mubr.bf16.mxu0 0
        %732 = vmatmul.mubr.bf16.gmra.mxu0 %v495
        %v733 = vpop.f32.mrf.mxu0
        %v734 = vadd.f32 0.0, %v733
        %v735 = vpop.f32.mrf.mxu0
        %v736 = vadd.f32 0.0, %v735
        %v737 = vpop.f32.mrf.mxu0
        %v738 = vadd.f32 0.0, %v737
        %v739 = vpop.f32.mrf.mxu0
        %v740 = vadd.f32 0.0, %v739
        %741 = vmatprep.mubr.bf16.mxu0 0
        %742 = vmatmul.mubr.bf16.gmra.mxu0 %v496
        %v743 = vpop.f32.mrf.mxu0
        %v744 = vadd.f32 0.0, %v743
        %v745 = vpop.f32.mrf.mxu0
        %v746 = vadd.f32 0.0, %v745
        %v747 = vpop.f32.mrf.mxu0
        %v748 = vadd.f32 0.0, %v747
        %v749 = vpop.f32.mrf.mxu0
        %v750 = vadd.f32 0.0, %v749
        %751 = vmatprep.mubr.bf16.mxu0 0
        %752 = vmatmul.mubr.bf16.gmra.mxu0 %v497
        %v753 = vpop.f32.mrf.mxu0
        %v754 = vadd.f32 0.0, %v753
        %v755 = vpop.f32.mrf.mxu0
        %v756 = vadd.f32 0.0, %v755
        %v757 = vpop.f32.mrf.mxu0
        %v758 = vadd.f32 0.0, %v757
        %v759 = vpop.f32.mrf.mxu0
        %v760 = vadd.f32 0.0, %v759
        %761 = vmatprep.mubr.bf16.mxu0 0
        %762 = vmatmul.mubr.bf16.gmra.mxu0 %v498
        %v763 = vpop.f32.mrf.mxu0
        %v764 = vadd.f32 0.0, %v763
        %v765 = vpop.f32.mrf.mxu0
        %v766 = vadd.f32 0.0, %v765
        %v767 = vpop.f32.mrf.mxu0
        %v768 = vadd.f32 0.0, %v767
        %v769 = vpop.f32.mrf.mxu0
        %v770 = vadd.f32 0.0, %v769
        %771 = vdwg.mxu0
        %772 = vmatprep.subr.bf16.mxu0 0
        %773 = vmatpush1.bf16.msra.mxu0 %v634
        %774 = vmatprep.subr.bf16.mxu0 0
        %775 = vmatpush1.bf16.msra.mxu0 %v631
        %776 = vmatprep.subr.bf16.mxu0 0
        %777 = vmatpush1.bf16.msra.mxu0 %v628
        %778 = vmatprep.subr.bf16.mxu0 0
        %779 = vmatpush1.bf16.msra.mxu0 %v625
        %780 = vmatprep.subr.bf16.mxu0 0
        %781 = vmatpush1.bf16.msra.mxu0 %v622
        %782 = vmatprep.subr.bf16.mxu0 0
        %783 = vmatpush1.bf16.msra.mxu0 %v619
        %784 = vmatprep.subr.bf16.mxu0 0
        %785 = vmatpush1.bf16.msra.mxu0 %v616
        %786 = vmatprep.subr.bf16.mxu0 0
        %787 = vmatpush1.bf16.msra.mxu0 %v613
        %788 = vmatprep.subr.bf16.mxu0 0
        %789 = vmatpush2.bf16.msra.mxu0 0
        %790 = vmatprep.subr.bf16.mxu0 0
        %791 = vmatpush2.bf16.msra.mxu0 0
        %792 = vmatprep.subr.bf16.mxu0 0
        %793 = vmatpush2.bf16.msra.mxu0 0
        %794 = vmatprep.subr.bf16.mxu0 0
        %795 = vmatpush2.bf16.msra.mxu0 0
        %796 = vmatprep.subr.bf16.mxu0 0
        %797 = vmatpush2.bf16.msra.mxu0 0
        %798 = vmatprep.subr.bf16.mxu0 0
        %799 = vmatpush2.bf16.msra.mxu0 0
        %800 = vmatprep.subr.bf16.mxu0 0
        %801 = vmatpush2.bf16.msra.mxu0 0
        %802 = vmatprep.subr.bf16.mxu0 0
        %803 = vmatpush2.bf16.msra.mxu0 0
        %804 = vmatprep.mubr.bf16.mxu0 0
        %805 = vmatmul.mubr.bf16.gmra.mxu0 %v491
        %v806 = vpop.f32.mrf.mxu0
        %v807 = vadd.f32 0.0, %v806
        %v808 = vpop.f32.mrf.mxu0
        %v809 = vpop.f32.mrf.mxu0
        %v810 = vadd.f32 0.0, %v809
        %v811 = vpop.f32.mrf.mxu0
        %812 = vmatprep.mubr.bf16.mxu0 0
        %813 = vmatmul.mubr.bf16.gmra.mxu0 %v492
        %v814 = vpop.f32.mrf.mxu0
        %v815 = vadd.f32 0.0, %v814
        %v816 = vpop.f32.mrf.mxu0
        %v817 = vpop.f32.mrf.mxu0
        %v818 = vadd.f32 0.0, %v817
        %v819 = vpop.f32.mrf.mxu0
        %820 = vmatprep.mubr.bf16.mxu0 0
        %821 = vmatmul.mubr.bf16.gmra.mxu0 %v493
        %v822 = vpop.f32.mrf.mxu0
        %v823 = vadd.f32 0.0, %v822
        %v824 = vpop.f32.mrf.mxu0
        %v825 = vpop.f32.mrf.mxu0
        %v826 = vadd.f32 0.0, %v825
        %v827 = vpop.f32.mrf.mxu0
        %828 = vmatprep.mubr.bf16.mxu0 0
        %829 = vmatmul.mubr.bf16.gmra.mxu0 %v494
        %v830 = vpop.f32.mrf.mxu0
        %v831 = vadd.f32 0.0, %v830
        %v832 = vpop.f32.mrf.mxu0
        %v833 = vpop.f32.mrf.mxu0
        %v834 = vadd.f32 0.0, %v833
        %v835 = vpop.f32.mrf.mxu0
        %836 = vmatprep.mubr.bf16.mxu0 0
        %837 = vmatmul.mubr.bf16.gmra.mxu0 %v495
        %v838 = vpop.f32.mrf.mxu0
        %v839 = vadd.f32 0.0, %v838
        %v840 = vpop.f32.mrf.mxu0
        %v841 = vpop.f32.mrf.mxu0
        %v842 = vadd.f32 0.0, %v841
        %v843 = vpop.f32.mrf.mxu0
        %844 = vmatprep.mubr.bf16.mxu0 0
        %845 = vmatmul.mubr.bf16.gmra.mxu0 %v496
        %v846 = vpop.f32.mrf.mxu0
        %v847 = vadd.f32 0.0, %v846
        %v848 = vpop.f32.mrf.mxu0
        %v849 = vpop.f32.mrf.mxu0
        %v850 = vadd.f32 0.0, %v849
        %v851 = vpop.f32.mrf.mxu0
        %852 = vmatprep.mubr.bf16.mxu0 0
        %853 = vmatmul.mubr.bf16.gmra.mxu0 %v497
        %v854 = vpop.f32.mrf.mxu0
        %v855 = vadd.f32 0.0, %v854
        %v856 = vpop.f32.mrf.mxu0
        %v857 = vpop.f32.mrf.mxu0
        %v858 = vadd.f32 0.0, %v857
        %v859 = vpop.f32.mrf.mxu0
        %860 = vmatprep.mubr.bf16.mxu0 0
        %861 = vmatmul.mubr.bf16.gmra.mxu0 %v498
        %v862 = vpop.f32.mrf.mxu0
        %v863 = vadd.f32 0.0, %v862
        %v864 = vpop.f32.mrf.mxu0
        %v865 = vpop.f32.mrf.mxu0
        %v866 = vadd.f32 0.0, %v865
        %v867 = vpop.f32.mrf.mxu0
        %868 = vdwg.mxu0
        %v869 = vmul.f32 %v694, 0.125
        %v870 = vmul.f32 %v698, 0.125
        %v871 = vmul.f32 %v704, 0.125
        %v872 = vmul.f32 %v708, 0.125
        %v873 = vmul.f32 %v714, 0.125
        %v874 = vmul.f32 %v718, 0.125
        %v875 = vmul.f32 %v724, 0.125
        %v876 = vmul.f32 %v728, 0.125
        %v877 = vmul.f32 %v734, 0.125
        %v878 = vmul.f32 %v738, 0.125
        %v879 = vmul.f32 %v744, 0.125
        %v880 = vmul.f32 %v748, 0.125
        %v881 = vmul.f32 %v754, 0.125
        %v882 = vmul.f32 %v758, 0.125
        %v883 = vmul.f32 %v764, 0.125
        %v884 = vmul.f32 %v768, 0.125
        %v885 = vpack.c.bf16 %v870, %v869
        %v886 = vpack.c.bf16 %v872, %v871
        %v887 = vpack.c.bf16 %v874, %v873
        %v888 = vpack.c.bf16 %v876, %v875
        %v889 = vpack.c.bf16 %v878, %v877
        %v890 = vpack.c.bf16 %v880, %v879
        %v891 = vpack.c.bf16 %v882, %v881
        %v892 = vpack.c.bf16 %v884, %v883
        %v901 = vunpack.c.l.b16 %v885
        %v902 = vunpack.c.h.b16 %v885
        %v903 = vunpack.c.l.b16 %v886
        %v904 = vunpack.c.h.b16 %v886
        %v905 = vunpack.c.l.b16 %v887
        %v906 = vunpack.c.h.b16 %v887
        %v907 = vunpack.c.l.b16 %v888
        %v908 = vunpack.c.h.b16 %v888
        %v909 = vunpack.c.l.b16 %v889
        %v910 = vunpack.c.h.b16 %v889
        %v911 = vunpack.c.l.b16 %v890
        %v912 = vunpack.c.h.b16 %v890
        %v913 = vunpack.c.l.b16 %v891
        %v914 = vunpack.c.h.b16 %v891
        %v915 = vunpack.c.l.b16 %v892
        %v916 = vunpack.c.h.b16 %v892
        %v917 = vpack.c.b16 %v901, %v901
        %v918 = vpack.c.b16 %v902, %v902
        %v919 = vpack.c.b16 %v903, %v903
        %v920 = vpack.c.b16 %v904, %v904
        %v921 = vpack.c.b16 %v905, %v905
        %v922 = vpack.c.b16 %v906, %v906
        %v923 = vpack.c.b16 %v907, %v907
        %v924 = vpack.c.b16 %v908, %v908
        %v925 = vpack.c.b16 %v909, %v909
        %v926 = vpack.c.b16 %v910, %v910
        %v927 = vpack.c.b16 %v911, %v911
        %v928 = vpack.c.b16 %v912, %v912
        %v929 = vpack.c.b16 %v913, %v913
        %v930 = vpack.c.b16 %v914, %v914
        %v931 = vpack.c.b16 %v915, %v915
        %v932 = vpack.c.b16 %v916, %v916
        %949 = vst [vmem:[%s248] sm:$0xf] %v917
        %950 = vst [vmem:[%s248 + $0xc] sm:$0xf] %v918
        %951 = vst [vmem:[%s248 + $0x18] sm:$0xf] %v919
        %952 = vst [vmem:[%s248 + $0x24] sm:$0xf] %v920
        %953 = vst [vmem:[%s248 + $0x30] sm:$0xf] %v921
        %954 = vst [vmem:[%s248 + $0x3c] sm:$0xf] %v922
        %955 = vst [vmem:[%s248 + $0x48] sm:$0xf] %v923
        %956 = vst [vmem:[%s248 + $0x54] sm:$0xf] %v924
        %957 = vst [vmem:[%s248 + $0x60] sm:$0xf] %v925
        %958 = vst [vmem:[%s248 + $0x6c] sm:$0xf] %v926
        %959 = vst [vmem:[%s248 + $0x78] sm:$0xf] %v927
        %960 = vst [vmem:[%s248 + $0x84] sm:$0xf] %v928
        %961 = vst [vmem:[%s248 + $0x90] sm:$0xf] %v929
        %962 = vst [vmem:[%s248 + $0x9c] sm:$0xf] %v930
        %963 = vst [vmem:[%s248 + $0xa8] sm:$0xf] %v931
        %964 = vst [vmem:[%s248 + $0xb4] sm:$0xf] %v932
        %v965 = vpack.c.bf16 %v700, %v696
        %v966 = vpack.c.bf16 %v810, %v807
        %v967 = vpack.c.bf16 %v710, %v706
        %v968 = vpack.c.bf16 %v818, %v815
        %v969 = vpack.c.bf16 %v720, %v716
        %v970 = vpack.c.bf16 %v826, %v823
        %v971 = vpack.c.bf16 %v730, %v726
        %v972 = vpack.c.bf16 %v834, %v831
        %v973 = vpack.c.bf16 %v740, %v736
        %v974 = vpack.c.bf16 %v842, %v839
        %v975 = vpack.c.bf16 %v750, %v746
        %v976 = vpack.c.bf16 %v850, %v847
        %v977 = vpack.c.bf16 %v760, %v756
        %v978 = vpack.c.bf16 %v858, %v855
        %v979 = vpack.c.bf16 %v770, %v766
        %v980 = vpack.c.bf16 %v866, %v863
        %v997 = vunpack.c.l.b16 %v965
        %v998 = vunpack.c.l.b16 %v966
        %v999 = vunpack.c.h.b16 %v965
        %v1000 = vunpack.c.h.b16 %v966
        %v1001 = vunpack.c.l.b16 %v967
        %v1002 = vunpack.c.l.b16 %v968
        %v1003 = vunpack.c.h.b16 %v967
        %v1004 = vunpack.c.h.b16 %v968
        %v1005 = vunpack.c.l.b16 %v969
        %v1006 = vunpack.c.l.b16 %v970
        %v1007 = vunpack.c.h.b16 %v969
        %v1008 = vunpack.c.h.b16 %v970
        %v1009 = vunpack.c.l.b16 %v971
        %v1010 = vunpack.c.l.b16 %v972
        %v1011 = vunpack.c.h.b16 %v971
        %v1012 = vunpack.c.h.b16 %v972
        %v1013 = vunpack.c.l.b16 %v973
        %v1014 = vunpack.c.l.b16 %v974
        %v1015 = vunpack.c.h.b16 %v973
        %v1016 = vunpack.c.h.b16 %v974
        %v1017 = vunpack.c.l.b16 %v975
        %v1018 = vunpack.c.l.b16 %v976
        %v1019 = vunpack.c.h.b16 %v975
        %v1020 = vunpack.c.h.b16 %v976
        %v1021 = vunpack.c.l.b16 %v977
        %v1022 = vunpack.c.l.b16 %v978
        %v1023 = vunpack.c.h.b16 %v977
        %v1024 = vunpack.c.h.b16 %v978
        %v1025 = vunpack.c.l.b16 %v979
        %v1026 = vunpack.c.l.b16 %v980
        %v1027 = vunpack.c.h.b16 %v979
        %v1028 = vunpack.c.h.b16 %v980
        %v1029 = vpack.c.b16 %v998, %v997
        %v1030 = vpack.c.b16 %v1000, %v999
        %v1031 = vpack.c.b16 %v1002, %v1001
        %v1032 = vpack.c.b16 %v1004, %v1003
        %v1033 = vpack.c.b16 %v1006, %v1005
        %v1034 = vpack.c.b16 %v1008, %v1007
        %v1035 = vpack.c.b16 %v1010, %v1009
        %v1036 = vpack.c.b16 %v1012, %v1011
        %v1037 = vpack.c.b16 %v1014, %v1013
        %v1038 = vpack.c.b16 %v1016, %v1015
        %v1039 = vpack.c.b16 %v1018, %v1017
        %v1040 = vpack.c.b16 %v1020, %v1019
        %v1041 = vpack.c.b16 %v1022, %v1021
        %v1042 = vpack.c.b16 %v1024, %v1023
        %v1043 = vpack.c.b16 %v1026, %v1025
        %v1044 = vpack.c.b16 %v1028, %v1027
        %1061 = vst [vmem:[%s248 + $0x4] sm:$0xff] %v1029
        %1062 = vst [vmem:[%s248 + $0x10] sm:$0xff] %v1030
        %1063 = vst [vmem:[%s248 + $0x1c] sm:$0xff] %v1031
        %1064 = vst [vmem:[%s248 + $0x28] sm:$0xff] %v1032
        %1065 = vst [vmem:[%s248 + $0x34] sm:$0xff] %v1033
        %1066 = vst [vmem:[%s248 + $0x40] sm:$0xff] %v1034
        %1067 = vst [vmem:[%s248 + $0x4c] sm:$0xff] %v1035
        %1068 = vst [vmem:[%s248 + $0x58] sm:$0xff] %v1036
        %1069 = vst [vmem:[%s248 + $0x64] sm:$0xff] %v1037
        %1070 = vst [vmem:[%s248 + $0x70] sm:$0xff] %v1038
        %1071 = vst [vmem:[%s248 + $0x7c] sm:$0xff] %v1039
        %1072 = vst [vmem:[%s248 + $0x88] sm:$0xff] %v1040
        %1073 = vst [vmem:[%s248 + $0x94] sm:$0xff] %v1041
        %1074 = vst [vmem:[%s248 + $0xa0] sm:$0xff] %v1042
        %1075 = vst [vmem:[%s248 + $0xac] sm:$0xff] %v1043
        %1076 = vst [vmem:[%s248 + $0xb8] sm:$0xff] %v1044
        %s1077 = sand.u32 %s135, 1
        %s1078 = scalar_lea.sflag [#allocation4], %s1077
        %s1079 = sand.u32 %s135, 1
        %s1080 = smul.addr %s1079, 192
        %s1081 = scalar_lea.vmem [#allocation7], %s1080
        // Predicated region
        $region45: #{tpu_custom_call.1} parent=35 // pred_check
          %p1082 = pneg %p145
        $region46: #{tpu_custom_call.1} parent=35 // pred_check_branch
          %1084 = sbr.rel (%p1082) target = $region48
        $region47: #{tpu_custom_call.1} parent=35 // pred_region
          %s1085 = smul.u32 16, %s27
          %s1087 = ssub.s32 3072, 3072
          %1088 = vsyncadd %s1078, %s1087
          %s1089 = smul.addr %s1085, 3
          %s1090 = smul.addr %s26, 96
          %s1091 = sadd.s32 %s1089, %s1090
          %s1092 = smul.addr %s1091, 64
          %s1093 = scalar_lea.hbm %s4, %s1092
          %s1094 = sshll.u32 %s1081, 4
          %s1095 = int_to_ptr.vmem [resolvable:$true] %s1094
          %1100 = dma.vmem_to_hbm [thread:$0]  %s1095, 3072, %s1093, %s1078, 192, 192, 12
        $region48: #{tpu_custom_call.1} parent=35 // pred_fallthru
          _
      $region36: #{tpu_custom_call.1} parent=5 // pred_fallthru
        _
      %p1101 = scmp.le.s32.totalorder 2, %s17
      // Predicated region
      $region49: #{tpu_custom_call.1} parent=5 // pred_check
        %p1102 = pneg %p1101
      $region50: #{tpu_custom_call.1} parent=5 // pred_check_branch
        %1104 = sbr.rel (%p1102) target = $region52
      $region51: #{tpu_custom_call.1} parent=5 // pred_region
        %s1105 = ssub.s32 %s17, 2
        // Predicated region
        $region53: #{tpu_custom_call.1} parent=51 // pred_check
          %p1106 = pneg %p151
        $region54: #{tpu_custom_call.1} parent=51 // pred_check_branch
          %1108 = sbr.rel (%p1106) target = $region56
        $region55: #{tpu_custom_call.1} parent=51 // pred_region
          %s1109 = sand.u32 %s136, 1
          %s1110 = scalar_lea.sflag [#allocation4], %s1109
          %s1111 = sand.u32 %s136, 1
          %s1112 = smul.addr %s1111, 192
          %s1113 = scalar_lea.vmem [#allocation7], %s1112
          %1114 = dma.done %s1110, 3072
        $region56: #{tpu_custom_call.1} parent=51 // pred_fallthru
          _
      $region52: #{tpu_custom_call.1} parent=5 // pred_fallthru
        _
    $region6: #{tpu_custom_call.1} parent=1 // loop_footer
      %s21 = sadd.s32 1, %s17
    $region7: #{tpu_custom_call.1} parent=1 // loop_footer_branch
      %16 = sbr.rel target = $region3
    $region8: #{tpu_custom_call.1} parent=1 // loop_exit
      _
    %1115 = vsyncpa [#allocation3], 1
    %s1116 = scalar_lea.sflag [#allocation3], 1
    %1117 = vsyncpa %s1116, 1
    %1118 = vsyncpa [#allocation6], 1
    %1119 = vsyncpa [#allocation4], 1
    %s1120 = scalar_lea.sflag [#allocation4], 1
    %1121 = vsyncpa %s1120, 1

// kernel: tpu_custom_call.1
$region0: #{tpu_custom_call.1}
  #allocation0 [shape = 'u32[]', space=smem, size = 0x4, offset = 0x4, fixed_abs, tag = 'smem constant byte address 0x4 - core index']
  #allocation1 [shape = 'u32[144,128]{1,0:T(1,128)}', space=vmem, size = 0x12000, scoped, tag = 'internal scratch']
  %s0 = inlined_call_operand.hbm [shape: f32[2,256,128], index: 0, kind: input, shape index: {}]
  %s1 = inlined_call_operand.vmem [shape: f32[1,128], index: 1, kind: input, shape index: {}]
  %s2 = inlined_call_operand.vmem [shape: f32[1,128], index: 2, kind: input, shape index: {}]
  %s3 = inlined_call_operand.hbm [shape: bf16[128,384], index: 3, kind: input, shape index: {}]
  %s4 = inlined_call_operand.hbm [shape: bf16[2,256,384], index: 4, kind: output, shape index: {}]
  %s5 = sld [smem:[#allocation0]]
  $region57: #{tpu_custom_call.1} parent=0
    _
  %s7 = ssub.s32 1, %s5
  %s8 = scalar_select 0, %s7, %s5
  $region1: #{tpu_custom_call.1} parent=0
    #allocation2 [shape = 'u8[131072]{0}', space=vmem, size = 0x20000, scoped, tag = 'input window, operand 0']
    #allocation3 [shape = 's32[2]{0}', space=sflag, size = 0x8, scoped, tag = 'scoped memory for tpu_custom_call.1']
    #allocation4 [shape = 's32[2]{0}', space=sflag, size = 0x8, scoped, tag = 'scoped memory for tpu_custom_call.1']
    #allocation5 [shape = 'u8[98304]{0}', space=vmem, size = 0x18000, scoped, tag = 'input window, operand 3, single buffered']
    #allocation6 [shape = 's32[1]{0}', space=sflag, size = 0x4, scoped, tag = 'scoped memory for tpu_custom_call.1']
    #allocation7 [shape = 'u8[196608]{0}', space=vmem, size = 0x30000, scoped, tag = 'output window, operand 0']
    %9 = vsyncpa [#allocation3], 0
    %s10 = scalar_lea.sflag [#allocation3], 1
    %11 = vsyncpa %s10, 0
    %12 = vsyncpa [#allocation6], 0
    %13 = vsyncpa [#allocation4], 0
    %s14 = scalar_lea.sflag [#allocation4], 1
    %15 = vsyncpa %s14, 0
    loop: start=0, step=1, limit=6
    $region2: #{tpu_custom_call.1} parent=1 // loop_pre_header
      _
    $region3: #{tpu_custom_call.1} parent=1 // loop_header
      %s17 = sphi 0, %s21
      %p18 = scmp.ge.s32.totalorder %s17, 6
      %s24 = sphi 0, %s36
      %s25 = sphi 0, %s32
      %s26 = sphi 0, %s24
      %s27 = sphi 0, %s25
      %s28 = sphi 0, %s26
      %s29 = sphi 0, %s27
      %s41 = sphi 0, %s43
      %s44 = sphi 0, %s41
      %s45 = sphi 0, %s44
      %s61 = sphi 0, %s45
      %s65 = sphi 0, %s65
      %s67 = sphi 0, %s65
      %s68 = sphi 0, %s67
      %s82 = sphi 0, %s68
      %s86 = sphi 0, %s86
      %s88 = sphi 0, %s86
      %s89 = sphi 0, %s88
      %s103 = sphi 0, %s89
      %s107 = sphi 0, %s107
      %s109 = sphi 0, %s107
      %s110 = sphi 0, %s109
      %s124 = sphi 0, %s110
      %s132 = sphi 0, %s134
      %s135 = sphi 0, %s132
      %s136 = sphi 0, %s135
      %s152 = sphi 0, %s136
    $region4: #{tpu_custom_call.1} parent=1 // loop_header_branch
      %20 = sbr.rel (%p18) target = $region8
    $region5: #{tpu_custom_call.1} parent=1 // loop_body
      %s22 = ssub.s32 %s17, 1
      %s23 = ssub.s32 %s17, 2
      %s30 = sadd.s32 1, %s25
      %p31 = scmp.ge.s32.totalorder %s30, 2
      %s32 = scalar_select %p31, 0, %s30
      %s33 = sadd.s32 1, %s24
      %s34 = scalar_select %p31, %s33, %s24
      %p35 = scmp.ge.s32.totalorder %s34, 2
      %s36 = scalar_select %p35, 0, %s34
      %s37 = ssub.s32 %s24, %s36
      %s38 = ssub.s32 %s25, %s32
      %s39 = sor.u32 %s37, %s38
      %p40 = scmp.eq.s32.totalorder %s39, 0
      %s42 = sadd.s32 %s41, 1
      %s43 = scalar_select %p40, %s41, %s42
      %p46 = pneg %p40
      %p47 = scmp.eq.s32.totalorder %s17, 3
      %p48 = por %p46, %p47
      %p49 = scmp.ne.s32.totalorder %s41, %s44
      %p50 = scmp.eq.s32.totalorder %s17, 0
      %p51 = por %p49, %p50
      %p52 = scmp.ne.s32.totalorder %s41, %s44
      %p53 = scmp.eq.s32.totalorder %s22, 3
      %p54 = por %p52, %p53
      %p55 = scmp.ne.s32.totalorder %s44, %s45
      %p56 = scmp.eq.s32.totalorder %s22, 0
      %p57 = por %p55, %p56
      %p58 = scmp.ne.s32.totalorder %s44, %s45
      %p59 = scmp.eq.s32.totalorder %s23, 3
      %p60 = por %p58, %p59
      %p62 = scmp.ne.s32.totalorder %s45, %s61
      %p63 = scmp.eq.s32.totalorder %s23, 0
      %p64 = por %p62, %p63
      %s66 = sadd.s32 %s65, 1
      %p69 = scmp.eq.s32.totalorder %s17, 3
      %p70 = scmp.ne.s32.totalorder %s65, %s67
      %p71 = scmp.eq.s32.totalorder %s17, 0
      %p72 = por %p70, %p71
      %p73 = scmp.ne.s32.totalorder %s65, %s67
      %p74 = scmp.eq.s32.totalorder %s22, 3
      %p75 = por %p73, %p74
      %p76 = scmp.ne.s32.totalorder %s67, %s68
      %p77 = scmp.eq.s32.totalorder %s22, 0
      %p78 = por %p76, %p77
      %p79 = scmp.ne.s32.totalorder %s67, %s68
      %p80 = scmp.eq.s32.totalorder %s23, 3
      %p81 = por %p79, %p80
      %p83 = scmp.ne.s32.totalorder %s68, %s82
      %p84 = scmp.eq.s32.totalorder %s23, 0
      %p85 = por %p83, %p84
      %s87 = sadd.s32 %s86, 1
      %p90 = scmp.eq.s32.totalorder %s17, 3
      %p91 = scmp.ne.s32.totalorder %s86, %s88
      %p92 = scmp.eq.s32.totalorder %s17, 0
      %p93 = por %p91, %p92
      %p94 = scmp.ne.s32.totalorder %s86, %s88
      %p95 = scmp.eq.s32.totalorder %s22, 3
      %p96 = por %p94, %p95
      %p97 = scmp.ne.s32.totalorder %s88, %s89
      %p98 = scmp.eq.s32.totalorder %s22, 0
      %p99 = por %p97, %p98
      %p100 = scmp.ne.s32.totalorder %s88, %s89
      %p101 = scmp.eq.s32.totalorder %s23, 3
      %p102 = por %p100, %p101
      %p104 = scmp.ne.s32.totalorder %s89, %s103
      %p105 = scmp.eq.s32.totalorder %s23, 0
      %p106 = por %p104, %p105
      %s108 = sadd.s32 %s107, 1
      %p111 = scmp.eq.s32.totalorder %s17, 3
      %p112 = scmp.ne.s32.totalorder %s107, %s109
      %p113 = scmp.eq.s32.totalorder %s17, 0
      %p114 = por %p112, %p113
      %p115 = scmp.ne.s32.totalorder %s107, %s109
      %p116 = scmp.eq.s32.totalorder %s22, 3
      %p117 = por %p115, %p116
      %p118 = scmp.ne.s32.totalorder %s109, %s110
      %p119 = scmp.eq.s32.totalorder %s22, 0
      %p120 = por %p118, %p119
      %p121 = scmp.ne.s32.totalorder %s109, %s110
      %p122 = scmp.eq.s32.totalorder %s23, 3
      %p123 = por %p121, %p122
      %p125 = scmp.ne.s32.totalorder %s110, %s124
      %p126 = scmp.eq.s32.totalorder %s23, 0
      %p127 = por %p125, %p126
      %s128 = ssub.s32 %s24, %s36
      %s129 = ssub.s32 %s25, %s32
      %s130 = sor.u32 %s128, %s129
      %p131 = scmp.eq.s32.totalorder %s130, 0
      %s133 = sadd.s32 %s132, 1
      %s134 = scalar_select %p131, %s132, %s133
      %p137 = pneg %p131
      %p138 = scmp.eq.s32.totalorder %s17, 3
      %p139 = por %p137, %p138
      %p140 = scmp.ne.s32.totalorder %s132, %s135
      %p141 = scmp.eq.s32.totalorder %s17, 0
      %p142 = por %p140, %p141
      %p143 = scmp.ne.s32.totalorder %s132, %s135
      %p144 = scmp.eq.s32.totalorder %s22, 3
      %p145 = por %p143, %p144
      %p146 = scmp.ne.s32.totalorder %s135, %s136
      %p147 = scmp.eq.s32.totalorder %s22, 0
      %p148 = por %p146, %p147
      %p149 = scmp.ne.s32.totalorder %s135, %s136
      %p150 = scmp.eq.s32.totalorder %s23, 3
      %p151 = por %p149, %p150
      %p153 = scmp.ne.s32.totalorder %s136, %s152
      %p154 = scmp.eq.s32.totalorder %s23, 0
      %p155 = por %p153, %p154
      %p156 = scmp.le.s32.totalorder 1, %s17
      %p157 = scmp.lt.s32.totalorder %s17, 5
      %p158 = pnand %p156, %p157
      %p159 = pneg %p158
      // Predicated region
      $region9: #{tpu_custom_call.1} parent=5 // pred_check
        _
      $region10: #{tpu_custom_call.1} parent=5 // pred_check_branch
        %161 = sbr.rel (%p158) target = $region12
      $region11: #{tpu_custom_call.1} parent=5 // pred_region
        %s162 = ssub.s32 %s17, 1
        // Predicated region
        $region13: #{tpu_custom_call.1} parent=11 // pred_check
          %p163 = pneg %p78
        $region14: #{tpu_custom_call.1} parent=11 // pred_check_branch
          %165 = sbr.rel (%p163) target = $region16
        $region15: #{tpu_custom_call.1} parent=11 // pred_region
          _
        $region16: #{tpu_custom_call.1} parent=11 // pred_fallthru
          _
        // Predicated region
        $region17: #{tpu_custom_call.1} parent=11 // pred_check
          %p166 = pneg %p99
        $region18: #{tpu_custom_call.1} parent=11 // pred_check_branch
          %168 = sbr.rel (%p166) target = $region20
        $region19: #{tpu_custom_call.1} parent=11 // pred_region
          _
        $region20: #{tpu_custom_call.1} parent=11 // pred_fallthru
          _
        // Predicated region
        $region21: #{tpu_custom_call.1} parent=11 // pred_check
          %p169 = pneg %p120
        $region22: #{tpu_custom_call.1} parent=11 // pred_check_branch
          %171 = sbr.rel (%p169) target = $region24
        $region23: #{tpu_custom_call.1} parent=11 // pred_region
          %s173 = ssub.s32 3072, 3072
          %174 = vsyncadd [#allocation6], %s173
          %s175 = sshll.u32 [#allocation5], 4
          %s176 = int_to_ptr.vmem [resolvable:$true] %s175
          %181 = dma.hbm_to_vmem [thread:$0]  %s3, 3072, %s176, [#allocation6], 192, 192, 12
        $region24: #{tpu_custom_call.1} parent=11 // pred_fallthru
          _
      $region12: #{tpu_custom_call.1} parent=5 // pred_fallthru
        _
      %p182 = scmp.lt.s32.totalorder %s17, 4
      // Predicated region
      $region25: #{tpu_custom_call.1} parent=5 // pred_check
        %p183 = pneg %p182
      $region26: #{tpu_custom_call.1} parent=5 // pred_check_branch
        %185 = sbr.rel (%p183) target = $region28
      $region27: #{tpu_custom_call.1} parent=5 // pred_region
        // Predicated region
        $region29: #{tpu_custom_call.1} parent=27 // pred_check
          %p186 = pneg %p51
        $region30: #{tpu_custom_call.1} parent=27 // pred_check_branch
          %188 = sbr.rel (%p186) target = $region32
        $region31: #{tpu_custom_call.1} parent=27 // pred_region
          %s189 = sand.u32 %s41, 1
          %s190 = scalar_lea.sflag [#allocation3], %s189
          %s191 = sand.u32 %s41, 1
          %s192 = smul.addr %s191, 128
          %s193 = scalar_lea.vmem [#allocation2], %s192
          %s194 = smul.u32 16, %s25
          %s196 = ssub.s32 2048, 2048
          %197 = vsyncadd %s190, %s196
          %s198 = smul.addr %s24, 32
          %s199 = sadd.s32 %s194, %s198
          %s200 = smul.addr %s199, 128
          %s201 = scalar_lea.hbm %s0, %s200
          %s202 = sshll.u32 %s193, 4
          %s203 = int_to_ptr.vmem [resolvable:$true] %s202
          %208 = dma.hbm_to_vmem [thread:$0]  %s201, 2048, %s203, %s190, 128, 128, 8
        $region32: #{tpu_custom_call.1} parent=27 // pred_fallthru
          _
      $region28: #{tpu_custom_call.1} parent=5 // pred_fallthru
        _
      %p209 = scmp.le.s32.totalorder 1, %s17
      %p210 = scmp.lt.s32.totalorder %s17, 5
      %p211 = pnand %p209, %p210
      %p212 = pneg %p211
      // Predicated region
      $region33: #{tpu_custom_call.1} parent=5 // pred_check
        _
      $region34: #{tpu_custom_call.1} parent=5 // pred_check_branch
        %214 = sbr.rel (%p211) target = $region36
      $region35: #{tpu_custom_call.1} parent=5 // pred_region
        %s215 = ssub.s32 %s17, 1
        %s216 = sand.u32 %s44, 1
        %s217 = scalar_lea.sflag [#allocation3], %s216
        %s218 = sand.u32 %s44, 1
        %s219 = smul.addr %s218, 128
        %s220 = scalar_lea.vmem [#allocation2], %s219
        // Predicated region
        $region37: #{tpu_custom_call.1} parent=35 // pred_check
          %p221 = pneg %p57
        $region38: #{tpu_custom_call.1} parent=35 // pred_check_branch
          %223 = sbr.rel (%p221) target = $region40
        $region39: #{tpu_custom_call.1} parent=35 // pred_region
          %224 = dma.done %s217, 2048
        $region40: #{tpu_custom_call.1} parent=35 // pred_fallthru
          _
        // Predicated region
        $region41: #{tpu_custom_call.1} parent=35 // pred_check
          %p225 = pneg %p120
        $region42: #{tpu_custom_call.1} parent=35 // pred_check_branch
          %227 = sbr.rel (%p225) target = $region44
        $region43: #{tpu_custom_call.1} parent=35 // pred_region
          %228 = dma.done [#allocation6], 3072
        $region44: #{tpu_custom_call.1} parent=35 // pred_fallthru
          _
        %s229 = sand.u32 %s44, 1
        %s230 = scalar_lea.sflag [#allocation3], %s229
        %s231 = sand.u32 %s44, 1
        %s232 = smul.addr %s231, 128
        %s233 = scalar_lea.vmem [#allocation2], %s232
        %p234 = pneg %p57
        %p235 = pneg %p54
        %p236 = pneg %p78
        %p237 = pneg %p75
        %p238 = pneg %p99
        %p239 = pneg %p96
        %p240 = pneg %p120
        %p241 = pneg %p117
        %p242 = pneg %p148
        %p243 = pneg %p145
        %s244 = sand.u32 %s135, 1
        %s245 = scalar_lea.sflag [#allocation4], %s244
        %s246 = sand.u32 %s135, 1
        %s247 = smul.addr %s246, 192
        %s248 = scalar_lea.vmem [#allocation7], %s247
        %s249 = smul.u32 16, %s27
        %s250 = smul.u32 16, %s27
        %v252 = vld [vmem:[%s220] sm:$0xff]
        %v253 = vld [vmem:[%s220 + $0x8] sm:$0xff]
        %v254 = vld [vmem:[%s220 + $0x10] sm:$0xff]
        %v255 = vld [vmem:[%s220 + $0x18] sm:$0xff]
        %v256 = vld [vmem:[%s220 + $0x20] sm:$0xff]
        %v257 = vld [vmem:[%s220 + $0x28] sm:$0xff]
        %v258 = vld [vmem:[%s220 + $0x30] sm:$0xff]
        %v259 = vld [vmem:[%s220 + $0x38] sm:$0xff]
        %v260 = vld [vmem:[%s220 + $0x40] sm:$0xff]
        %v261 = vld [vmem:[%s220 + $0x48] sm:$0xff]
        %v262 = vld [vmem:[%s220 + $0x50] sm:$0xff]
        %v263 = vld [vmem:[%s220 + $0x58] sm:$0xff]
        %v264 = vld [vmem:[%s220 + $0x60] sm:$0xff]
        %v265 = vld [vmem:[%s220 + $0x68] sm:$0xff]
        %v266 = vld [vmem:[%s220 + $0x70] sm:$0xff]
        %v267 = vld [vmem:[%s220 + $0x78] sm:$0xff]
        %268 = vadd.xlane.f32.xlu0 %v252
        %v269 = vpop.xlane.xlu0 %268
        %270 = vadd.xlane.f32.xlu0 %v253
        %v271 = vpop.xlane.xlu0 %270
        %272 = vadd.xlane.f32.xlu0 %v254
        %v273 = vpop.xlane.xlu0 %272
        %274 = vadd.xlane.f32.xlu0 %v255
        %v275 = vpop.xlane.xlu0 %274
        %276 = vadd.xlane.f32.xlu0 %v256
        %v277 = vpop.xlane.xlu0 %276
        %278 = vadd.xlane.f32.xlu0 %v257
        %v279 = vpop.xlane.xlu0 %278
        %280 = vadd.xlane.f32.xlu0 %v258
        %v281 = vpop.xlane.xlu0 %280
        %282 = vadd.xlane.f32.xlu0 %v259
        %v283 = vpop.xlane.xlu0 %282
        %284 = vadd.xlane.f32.xlu0 %v260
        %v285 = vpop.xlane.xlu0 %284
        %286 = vadd.xlane.f32.xlu0 %v261
        %v287 = vpop.xlane.xlu0 %286
        %288 = vadd.xlane.f32.xlu0 %v262
        %v289 = vpop.xlane.xlu0 %288
        %290 = vadd.xlane.f32.xlu0 %v263
        %v291 = vpop.xlane.xlu0 %290
        %292 = vadd.xlane.f32.xlu0 %v264
        %v293 = vpop.xlane.xlu0 %292
        %294 = vadd.xlane.f32.xlu0 %v265
        %v295 = vpop.xlane.xlu0 %294
        %296 = vadd.xlane.f32.xlu0 %v266
        %v297 = vpop.xlane.xlu0 %296
        %298 = vadd.xlane.f32.xlu0 %v267
        %v299 = vpop.xlane.xlu0 %298
        %v300 = vrcp.pop 128.0
        %v301 = vmul.f32 %v269, %v300
        %v302 = vmul.f32 %v271, %v300
        %v303 = vmul.f32 %v273, %v300
        %v304 = vmul.f32 %v275, %v300
        %v305 = vmul.f32 %v277, %v300
        %v306 = vmul.f32 %v279, %v300
        %v307 = vmul.f32 %v281, %v300
        %v308 = vmul.f32 %v283, %v300
        %v309 = vmul.f32 %v285, %v300
        %v310 = vmul.f32 %v287, %v300
        %v311 = vmul.f32 %v289, %v300
        %v312 = vmul.f32 %v291, %v300
        %v313 = vmul.f32 %v293, %v300
        %v314 = vmul.f32 %v295, %v300
        %v315 = vmul.f32 %v297, %v300
        %v316 = vmul.f32 %v299, %v300
        %v317 = vsub.f32 %v252, %v301
        %v318 = vsub.f32 %v253, %v302
        %v319 = vsub.f32 %v254, %v303
        %v320 = vsub.f32 %v255, %v304
        %v321 = vsub.f32 %v256, %v305
        %v322 = vsub.f32 %v257, %v306
        %v323 = vsub.f32 %v258, %v307
        %v324 = vsub.f32 %v259, %v308
        %v325 = vsub.f32 %v260, %v309
        %v326 = vsub.f32 %v261, %v310
        %v327 = vsub.f32 %v262, %v311
        %v328 = vsub.f32 %v263, %v312
        %v329 = vsub.f32 %v264, %v313
        %v330 = vsub.f32 %v265, %v314
        %v331 = vsub.f32 %v266, %v315
        %v332 = vsub.f32 %v267, %v316
        %v333 = vmul.f32 %v317, %v317
        %v334 = vmul.f32 %v318, %v318
        %v335 = vmul.f32 %v319, %v319
        %v336 = vmul.f32 %v320, %v320
        %v337 = vmul.f32 %v321, %v321
        %v338 = vmul.f32 %v322, %v322
        %v339 = vmul.f32 %v323, %v323
        %v340 = vmul.f32 %v324, %v324
        %v341 = vmul.f32 %v325, %v325
        %v342 = vmul.f32 %v326, %v326
        %v343 = vmul.f32 %v327, %v327
        %v344 = vmul.f32 %v328, %v328
        %v345 = vmul.f32 %v329, %v329
        %v346 = vmul.f32 %v330, %v330
        %v347 = vmul.f32 %v331, %v331
        %v348 = vmul.f32 %v332, %v332
        %349 = vadd.xlane.f32.xlu0 %v333
        %v350 = vpop.xlane.xlu0 %349
        %351 = vadd.xlane.f32.xlu0 %v334
        %v352 = vpop.xlane.xlu0 %351
        %353 = vadd.xlane.f32.xlu0 %v335
        %v354 = vpop.xlane.xlu0 %353
        %355 = vadd.xlane.f32.xlu0 %v336
        %v356 = vpop.xlane.xlu0 %355
        %357 = vadd.xlane.f32.xlu0 %v337
        %v358 = vpop.xlane.xlu0 %357
        %359 = vadd.xlane.f32.xlu0 %v338
        %v360 = vpop.xlane.xlu0 %359
        %361 = vadd.xlane.f32.xlu0 %v339
        %v362 = vpop.xlane.xlu0 %361
        %363 = vadd.xlane.f32.xlu0 %v340
        %v364 = vpop.xlane.xlu0 %363
        %365 = vadd.xlane.f32.xlu0 %v341
        %v366 = vpop.xlane.xlu0 %365
        %367 = vadd.xlane.f32.xlu0 %v342
        %v368 = vpop.xlane.xlu0 %367
        %369 = vadd.xlane.f32.xlu0 %v343
        %v370 = vpop.xlane.xlu0 %369
        %371 = vadd.xlane.f32.xlu0 %v344
        %v372 = vpop.xlane.xlu0 %371
        %373 = vadd.xlane.f32.xlu0 %v345
        %v374 = vpop.xlane.xlu0 %373
        %375 = vadd.xlane.f32.xlu0 %v346
        %v376 = vpop.xlane.xlu0 %375
        %377 = vadd.xlane.f32.xlu0 %v347
        %v378 = vpop.xlane.xlu0 %377
        %379 = vadd.xlane.f32.xlu0 %v348
        %v380 = vpop.xlane.xlu0 %379
        %v381 = vmul.f32 %v350, %v300
        %v382 = vmul.f32 %v352, %v300
        %v383 = vmul.f32 %v354, %v300
        %v384 = vmul.f32 %v356, %v300
        %v385 = vmul.f32 %v358, %v300
        %v386 = vmul.f32 %v360, %v300
        %v387 = vmul.f32 %v362, %v300
        %v388 = vmul.f32 %v364, %v300
        %v389 = vmul.f32 %v366, %v300
        %v390 = vmul.f32 %v368, %v300
        %v391 = vmul.f32 %v370, %v300
        %v392 = vmul.f32 %v372, %v300
        %v393 = vmul.f32 %v374, %v300
        %v394 = vmul.f32 %v376, %v300
        %v395 = vmul.f32 %v378, %v300
        %v396 = vmul.f32 %v380, %v300
        %v397 = vadd.f32 %v381, 1e-05
        %v398 = vadd.f32 %v382, 1e-05
        %v399 = vadd.f32 %v383, 1e-05
        %v400 = vadd.f32 %v384, 1e-05
        %v401 = vadd.f32 %v385, 1e-05
        %v402 = vadd.f32 %v386, 1e-05
        %v403 = vadd.f32 %v387, 1e-05
        %v404 = vadd.f32 %v388, 1e-05
        %v405 = vadd.f32 %v389, 1e-05
        %v406 = vadd.f32 %v390, 1e-05
        %v407 = vadd.f32 %v391, 1e-05
        %v408 = vadd.f32 %v392, 1e-05
        %v409 = vadd.f32 %v393, 1e-05
        %v410 = vadd.f32 %v394, 1e-05
        %v411 = vadd.f32 %v395, 1e-05
        %v412 = vadd.f32 %v396, 1e-05
        %v413 = vrsqrt.pop %v397
        %v414 = vrsqrt.pop %v398
        %v415 = vrsqrt.pop %v399
        %v416 = vrsqrt.pop %v400
        %v417 = vrsqrt.pop %v401
        %v418 = vrsqrt.pop %v402
        %v419 = vrsqrt.pop %v403
        %v420 = vrsqrt.pop %v404
        %v421 = vrsqrt.pop %v405
        %v422 = vrsqrt.pop %v406
        %v423 = vrsqrt.pop %v407
        %v424 = vrsqrt.pop %v408
        %v425 = vrsqrt.pop %v409
        %v426 = vrsqrt.pop %v410
        %v427 = vrsqrt.pop %v411
        %v428 = vrsqrt.pop %v412
        %v429 = vmul.f32 %v317, %v413
        %v430 = vmul.f32 %v318, %v414
        %v431 = vmul.f32 %v319, %v415
        %v432 = vmul.f32 %v320, %v416
        %v433 = vmul.f32 %v321, %v417
        %v434 = vmul.f32 %v322, %v418
        %v435 = vmul.f32 %v323, %v419
        %v436 = vmul.f32 %v324, %v420
        %v437 = vmul.f32 %v325, %v421
        %v438 = vmul.f32 %v326, %v422
        %v439 = vmul.f32 %v327, %v423
        %v440 = vmul.f32 %v328, %v424
        %v441 = vmul.f32 %v329, %v425
        %v442 = vmul.f32 %v330, %v426
        %v443 = vmul.f32 %v331, %v427
        %v444 = vmul.f32 %v332, %v428
        %v445 = vld [vmem:[%s1] sm:$0x1]
        %v447 = vlaneseq
        %v448 = vshrl.u32 %v447, 7
        %v449 = vsub.s32 0, %v448
        %v450 = vrot.slane %v445, %v449
        %v452 = vmul.f32 %v429, %v450
        %v453 = vmul.f32 %v430, %v450
        %v454 = vmul.f32 %v431, %v450
        %v455 = vmul.f32 %v432, %v450
        %v456 = vmul.f32 %v433, %v450
        %v457 = vmul.f32 %v434, %v450
        %v458 = vmul.f32 %v435, %v450
        %v459 = vmul.f32 %v436, %v450
        %v460 = vmul.f32 %v437, %v450
        %v461 = vmul.f32 %v438, %v450
        %v462 = vmul.f32 %v439, %v450
        %v463 = vmul.f32 %v440, %v450
        %v464 = vmul.f32 %v441, %v450
        %v465 = vmul.f32 %v442, %v450
        %v466 = vmul.f32 %v443, %v450
        %v467 = vmul.f32 %v444, %v450
        %v468 = vld [vmem:[%s2] sm:$0x1]
        %v470 = vlaneseq
        %v471 = vshrl.u32 %v470, 7
        %v472 = vsub.s32 0, %v471
        %v473 = vrot.slane %v468, %v472
        %v475 = vadd.f32 %v452, %v473
        %v476 = vadd.f32 %v453, %v473
        %v477 = vadd.f32 %v454, %v473
        %v478 = vadd.f32 %v455, %v473
        %v479 = vadd.f32 %v456, %v473
        %v480 = vadd.f32 %v457, %v473
        %v481 = vadd.f32 %v458, %v473
        %v482 = vadd.f32 %v459, %v473
        %v483 = vadd.f32 %v460, %v473
        %v484 = vadd.f32 %v461, %v473
        %v485 = vadd.f32 %v462, %v473
        %v486 = vadd.f32 %v463, %v473
        %v487 = vadd.f32 %v464, %v473
        %v488 = vadd.f32 %v465, %v473
        %v489 = vadd.f32 %v466, %v473
        %v490 = vadd.f32 %v467, %v473
        %v491 = vpack.c.bf16 %v476, %v475
        %v492 = vpack.c.bf16 %v478, %v477
        %v493 = vpack.c.bf16 %v480, %v479
        %v494 = vpack.c.bf16 %v482, %v481
        %v495 = vpack.c.bf16 %v484, %v483
        %v496 = vpack.c.bf16 %v486, %v485
        %v497 = vpack.c.bf16 %v488, %v487
        %v498 = vpack.c.bf16 %v490, %v489
        %v499 = vld [vmem:[#allocation5] sm:$0xff]
        %v500 = vld [vmem:[#allocation5 + $0x8] sm:$0xf]
        %v501 = vld [vmem:[#allocation5 + $0xc] sm:$0xff]
        %v502 = vld [vmem:[#allocation5 + $0x14] sm:$0xf]
        %v503 = vld [vmem:[#allocation5 + $0x18] sm:$0xff]
        %v504 = vld [vmem:[#allocation5 + $0x20] sm:$0xf]
        %v505 = vld [vmem:[#allocation5 + $0x24] sm:$0xff]
        %v506 = vld [vmem:[#allocation5 + $0x2c] sm:$0xf]
        %v507 = vld [vmem:[#allocation5 + $0x30] sm:$0xff]
        %v508 = vld [vmem:[#allocation5 + $0x38] sm:$0xf]
        %v509 = vld [vmem:[#allocation5 + $0x3c] sm:$0xff]
        %v510 = vld [vmem:[#allocation5 + $0x44] sm:$0xf]
        %v511 = vld [vmem:[#allocation5 + $0x48] sm:$0xff]
        %v512 = vld [vmem:[#allocation5 + $0x50] sm:$0xf]
        %v513 = vld [vmem:[#allocation5 + $0x54] sm:$0xff]
        %v514 = vld [vmem:[#allocation5 + $0x5c] sm:$0xf]
        %v515 = vld [vmem:[#allocation5 + $0x60] sm:$0xff]
        %v516 = vld [vmem:[#allocation5 + $0x68] sm:$0xf]
        %v517 = vld [vmem:[#allocation5 + $0x6c] sm:$0xff]
        %v518 = vld [vmem:[#allocation5 + $0x74] sm:$0xf]
        %v519 = vld [vmem:[#allocation5 + $0x78] sm:$0xff]
        %v520 = vld [vmem:[#allocation5 + $0x80] sm:$0xf]
        %v521 = vld [vmem:[#allocation5 + $0x84] sm:$0xff]
        %v522 = vld [vmem:[#allocation5 + $0x8c] sm:$0xf]
        %v523 = vld [vmem:[#allocation5 + $0x90] sm:$0xff]
        %v524 = vld [vmem:[#allocation5 + $0x98] sm:$0xf]
        %v525 = vld [vmem:[#allocation5 + $0x9c] sm:$0xff]
        %v526 = vld [vmem:[#allocation5 + $0xa4] sm:$0xf]
        %v527 = vld [vmem:[#allocation5 + $0xa8] sm:$0xff]
        %v528 = vld [vmem:[#allocation5 + $0xb0] sm:$0xf]
        %v529 = vld [vmem:[#allocation5 + $0xb4] sm:$0xff]
        %v530 = vld [vmem:[#allocation5 + $0xbc] sm:$0xf]
        %v563 = vunpack.c.l.b16 %v499
        %v564 = vunpack.c.h.b16 %v499
        %v565 = vunpack.c.l.b16 %v500
        %v566 = vunpack.c.l.b16 %v501
        %v567 = vunpack.c.h.b16 %v501
        %v568 = vunpack.c.l.b16 %v502
        %v569 = vunpack.c.l.b16 %v503
        %v570 = vunpack.c.h.b16 %v503
        %v571 = vunpack.c.l.b16 %v504
        %v572 = vunpack.c.l.b16 %v505
        %v573 = vunpack.c.h.b16 %v505
        %v574 = vunpack.c.l.b16 %v506
        %v575 = vunpack.c.l.b16 %v507
        %v576 = vunpack.c.h.b16 %v507
        %v577 = vunpack.c.l.b16 %v508
        %v578 = vunpack.c.l.b16 %v509
        %v579 = vunpack.c.h.b16 %v509
        %v580 = vunpack.c.l.b16 %v510
        %v581 = vunpack.c.l.b16 %v511
        %v582 = vunpack.c.h.b16 %v511
        %v583 = vunpack.c.l.b16 %v512
        %v584 = vunpack.c.l.b16 %v513
        %v585 = vunpack.c.h.b16 %v513
        %v586 = vunpack.c.l.b16 %v514
        %v587 = vunpack.c.l.b16 %v515
        %v588 = vunpack.c.h.b16 %v515
        %v589 = vunpack.c.l.b16 %v516
        %v590 = vunpack.c.l.b16 %v517
        %v591 = vunpack.c.h.b16 %v517
        %v592 = vunpack.c.l.b16 %v518
        %v593 = vunpack.c.l.b16 %v519
        %v594 = vunpack.c.h.b16 %v519
        %v595 = vunpack.c.l.b16 %v520
        %v596 = vunpack.c.l.b16 %v521
        %v597 = vunpack.c.h.b16 %v521
        %v598 = vunpack.c.l.b16 %v522
        %v599 = vunpack.c.l.b16 %v523
        %v600 = vunpack.c.h.b16 %v523
        %v601 = vunpack.c.l.b16 %v524
        %v602 = vunpack.c.l.b16 %v525
        %v603 = vunpack.c.h.b16 %v525
        %v604 = vunpack.c.l.b16 %v526
        %v605 = vunpack.c.l.b16 %v527
        %v606 = vunpack.c.h.b16 %v527
        %v607 = vunpack.c.l.b16 %v528
        %v608 = vunpack.c.l.b16 %v529
        %v609 = vunpack.c.h.b16 %v529
        %v610 = vunpack.c.l.b16 %v530
        %v611 = vpack.c.b16 %v566, %v563
        %v612 = vpack.c.b16 %v567, %v564
        %v613 = vpack.c.b16 %v568, %v565
        %v614 = vpack.c.b16 %v572, %v569
        %v615 = vpack.c.b16 %v573, %v570
        %v616 = vpack.c.b16 %v574, %v571
        %v617 = vpack.c.b16 %v578, %v575
        %v618 = vpack.c.b16 %v579, %v576
        %v619 = vpack.c.b16 %v580, %v577
        %v620 = vpack.c.b16 %v584, %v581
        %v621 = vpack.c.b16 %v585, %v582
        %v622 = vpack.c.b16 %v586, %v583
        %v623 = vpack.c.b16 %v590, %v587
        %v624 = vpack.c.b16 %v591, %v588
        %v625 = vpack.c.b16 %v592, %v589
        %v626 = vpack.c.b16 %v596, %v593
        %v627 = vpack.c.b16 %v597, %v594
        %v628 = vpack.c.b16 %v598, %v595
        %v629 = vpack.c.b16 %v602, %v599
        %v630 = vpack.c.b16 %v603, %v600
        %v631 = vpack.c.b16 %v604, %v601
        %v632 = vpack.c.b16 %v608, %v605
        %v633 = vpack.c.b16 %v609, %v606
        %v634 = vpack.c.b16 %v610, %v607
        %659 = vmatprep.subr.bf16.mxu0 %v633
        %660 = vmatpush1.bf16.msra.mxu0 %v632
        %661 = vmatprep.subr.bf16.mxu0 %v630
        %662 = vmatpush1.bf16.msra.mxu0 %v629
        %663 = vmatprep.subr.bf16.mxu0 %v627
        %664 = vmatpush1.bf16.msra.mxu0 %v626
        %665 = vmatprep.subr.bf16.mxu0 %v624
        %666 = vmatpush1.bf16.msra.mxu0 %v623
        %667 = vmatprep.subr.bf16.mxu0 %v621
        %668 = vmatpush1.bf16.msra.mxu0 %v620
        %669 = vmatprep.subr.bf16.mxu0 %v618
        %670 = vmatpush1.bf16.msra.mxu0 %v617
        %671 = vmatprep.subr.bf16.mxu0 %v615
        %672 = vmatpush1.bf16.msra.mxu0 %v614
        %673 = vmatprep.subr.bf16.mxu0 %v612
        %674 = vmatpush1.bf16.msra.mxu0 %v611
        %675 = vmatprep.subr.bf16.mxu0 0
        %676 = vmatpush2.bf16.msra.mxu0 0
        %677 = vmatprep.subr.bf16.mxu0 0
        %678 = vmatpush2.bf16.msra.mxu0 0
        %679 = vmatprep.subr.bf16.mxu0 0
        %680 = vmatpush2.bf16.msra.mxu0 0
        %681 = vmatprep.subr.bf16.mxu0 0
        %682 = vmatpush2.bf16.msra.mxu0 0
        %683 = vmatprep.subr.bf16.mxu0 0
        %684 = vmatpush2.bf16.msra.mxu0 0
        %685 = vmatprep.subr.bf16.mxu0 0
        %686 = vmatpush2.bf16.msra.mxu0 0
        %687 = vmatprep.subr.bf16.mxu0 0
        %688 = vmatpush2.bf16.msra.mxu0 0
        %689 = vmatprep.subr.bf16.mxu0 0
        %690 = vmatpush2.bf16.msra.mxu0 0
        %691 = vmatprep.mubr.bf16.mxu0 0
        %692 = vmatmul.mubr.bf16.gmra.mxu0 %v491
        %v693 = vpop.f32.mrf.mxu0
        %v694 = vadd.f32 0.0, %v693
        %v695 = vpop.f32.mrf.mxu0
        %v696 = vadd.f32 0.0, %v695
        %v697 = vpop.f32.mrf.mxu0
        %v698 = vadd.f32 0.0, %v697
        %v699 = vpop.f32.mrf.mxu0
        %v700 = vadd.f32 0.0, %v699
        %701 = vmatprep.mubr.bf16.mxu0 0
        %702 = vmatmul.mubr.bf16.gmra.mxu0 %v492
        %v703 = vpop.f32.mrf.mxu0
        %v704 = vadd.f32 0.0, %v703
        %v705 = vpop.f32.mrf.mxu0
        %v706 = vadd.f32 0.0, %v705
        %v707 = vpop.f32.mrf.mxu0
        %v708 = vadd.f32 0.0, %v707
        %v709 = vpop.f32.mrf.mxu0
        %v710 = vadd.f32 0.0, %v709
        %711 = vmatprep.mubr.bf16.mxu0 0
        %712 = vmatmul.mubr.bf16.gmra.mxu0 %v493
        %v713 = vpop.f32.mrf.mxu0
        %v714 = vadd.f32 0.0, %v713
        %v715 = vpop.f32.mrf.mxu0
        %v716 = vadd.f32 0.0, %v715
        %v717 = vpop.f32.mrf.mxu0
        %v718 = vadd.f32 0.0, %v717
        %v719 = vpop.f32.mrf.mxu0
        %v720 = vadd.f32 0.0, %v719
        %721 = vmatprep.mubr.bf16.mxu0 0
        %722 = vmatmul.mubr.bf16.gmra.mxu0 %v494
        %v723 = vpop.f32.mrf.mxu0
        %v724 = vadd.f32 0.0, %v723
        %v725 = vpop.f32.mrf.mxu0
        %v726 = vadd.f32 0.0, %v725
        %v727 = vpop.f32.mrf.mxu0
        %v728 = vadd.f32 0.0, %v727
        %v729 = vpop.f32.mrf.mxu0
        %v730 = vadd.f32 0.0, %v729
        %731 = vmatprep.mubr.bf16.mxu0 0
        %732 = vmatmul.mubr.bf16.gmra.mxu0 %v495
        %v733 = vpop.f32.mrf.mxu0
        %v734 = vadd.f32 0.0, %v733
        %v735 = vpop.f32.mrf.mxu0
        %v736 = vadd.f32 0.0, %v735
        %v737 = vpop.f32.mrf.mxu0
        %v738 = vadd.f32 0.0, %v737
        %v739 = vpop.f32.mrf.mxu0
        %v740 = vadd.f32 0.0, %v739
        %741 = vmatprep.mubr.bf16.mxu0 0
        %742 = vmatmul.mubr.bf16.gmra.mxu0 %v496
        %v743 = vpop.f32.mrf.mxu0
        %v744 = vadd.f32 0.0, %v743
        %v745 = vpop.f32.mrf.mxu0
        %v746 = vadd.f32 0.0, %v745
        %v747 = vpop.f32.mrf.mxu0
        %v748 = vadd.f32 0.0, %v747
        %v749 = vpop.f32.mrf.mxu0
        %v750 = vadd.f32 0.0, %v749
        %751 = vmatprep.mubr.bf16.mxu0 0
        %752 = vmatmul.mubr.bf16.gmra.mxu0 %v497
        %v753 = vpop.f32.mrf.mxu0
        %v754 = vadd.f32 0.0, %v753
        %v755 = vpop.f32.mrf.mxu0
        %v756 = vadd.f32 0.0, %v755
        %v757 = vpop.f32.mrf.mxu0
        %v758 = vadd.f32 0.0, %v757
        %v759 = vpop.f32.mrf.mxu0
        %v760 = vadd.f32 0.0, %v759
        %761 = vmatprep.mubr.bf16.mxu0 0
        %762 = vmatmul.mubr.bf16.gmra.mxu0 %v498
        %v763 = vpop.f32.mrf.mxu0
        %v764 = vadd.f32 0.0, %v763
        %v765 = vpop.f32.mrf.mxu0
        %v766 = vadd.f32 0.0, %v765
        %v767 = vpop.f32.mrf.mxu0
        %v768 = vadd.f32 0.0, %v767
        %v769 = vpop.f32.mrf.mxu0
        %v770 = vadd.f32 0.0, %v769
        %771 = vdwg.mxu0
        %772 = vmatprep.subr.bf16.mxu0 0
        %773 = vmatpush1.bf16.msra.mxu0 %v634
        %774 = vmatprep.subr.bf16.mxu0 0
        %775 = vmatpush1.bf16.msra.mxu0 %v631
        %776 = vmatprep.subr.bf16.mxu0 0
        %777 = vmatpush1.bf16.msra.mxu0 %v628
        %778 = vmatprep.subr.bf16.mxu0 0
        %779 = vmatpush1.bf16.msra.mxu0 %v625
        %780 = vmatprep.subr.bf16.mxu0 0
        %781 = vmatpush1.bf16.msra.mxu0 %v622
        %782 = vmatprep.subr.bf16.mxu0 0
        %783 = vmatpush1.bf16.msra.mxu0 %v619
        %784 = vmatprep.subr.bf16.mxu0 0
        %785 = vmatpush1.bf16.msra.mxu0 %v616
        %786 = vmatprep.subr.bf16.mxu0 0
        %787 = vmatpush1.bf16.msra.mxu0 %v613
        %788 = vmatprep.subr.bf16.mxu0 0
        %789 = vmatpush2.bf16.msra.mxu0 0
        %790 = vmatprep.subr.bf16.mxu0 0
        %791 = vmatpush2.bf16.msra.mxu0 0
        %792 = vmatprep.subr.bf16.mxu0 0
        %793 = vmatpush2.bf16.msra.mxu0 0
        %794 = vmatprep.subr.bf16.mxu0 0
        %795 = vmatpush2.bf16.msra.mxu0 0
        %796 = vmatprep.subr.bf16.mxu0 0
        %797 = vmatpush2.bf16.msra.mxu0 0
        %798 = vmatprep.subr.bf16.mxu0 0
        %799 = vmatpush2.bf16.msra.mxu0 0
        %800 = vmatprep.subr.bf16.mxu0 0
        %801 = vmatpush2.bf16.msra.mxu0 0
        %802 = vmatprep.subr.bf16.mxu0 0
        %803 = vmatpush2.bf16.msra.mxu0 0
        %804 = vmatprep.mubr.bf16.mxu0 0
        %805 = vmatmul.mubr.bf16.gmra.mxu0 %v491
        %v806 = vpop.f32.mrf.mxu0
        %v807 = vadd.f32 0.0, %v806
        %v808 = vpop.f32.mrf.mxu0
        %v809 = vpop.f32.mrf.mxu0
        %v810 = vadd.f32 0.0, %v809
        %v811 = vpop.f32.mrf.mxu0
        %812 = vmatprep.mubr.bf16.mxu0 0
        %813 = vmatmul.mubr.bf16.gmra.mxu0 %v492
        %v814 = vpop.f32.mrf.mxu0
        %v815 = vadd.f32 0.0, %v814
        %v816 = vpop.f32.mrf.mxu0
        %v817 = vpop.f32.mrf.mxu0
        %v818 = vadd.f32 0.0, %v817
        %v819 = vpop.f32.mrf.mxu0
        %820 = vmatprep.mubr.bf16.mxu0 0
        %821 = vmatmul.mubr.bf16.gmra.mxu0 %v493
        %v822 = vpop.f32.mrf.mxu0
        %v823 = vadd.f32 0.0, %v822
        %v824 = vpop.f32.mrf.mxu0
        %v825 = vpop.f32.mrf.mxu0
        %v826 = vadd.f32 0.0, %v825
        %v827 = vpop.f32.mrf.mxu0
        %828 = vmatprep.mubr.bf16.mxu0 0
        %829 = vmatmul.mubr.bf16.gmra.mxu0 %v494
        %v830 = vpop.f32.mrf.mxu0
        %v831 = vadd.f32 0.0, %v830
        %v832 = vpop.f32.mrf.mxu0
        %v833 = vpop.f32.mrf.mxu0
        %v834 = vadd.f32 0.0, %v833
        %v835 = vpop.f32.mrf.mxu0
        %836 = vmatprep.mubr.bf16.mxu0 0
        %837 = vmatmul.mubr.bf16.gmra.mxu0 %v495
        %v838 = vpop.f32.mrf.mxu0
        %v839 = vadd.f32 0.0, %v838
        %v840 = vpop.f32.mrf.mxu0
        %v841 = vpop.f32.mrf.mxu0
        %v842 = vadd.f32 0.0, %v841
        %v843 = vpop.f32.mrf.mxu0
        %844 = vmatprep.mubr.bf16.mxu0 0
        %845 = vmatmul.mubr.bf16.gmra.mxu0 %v496
        %v846 = vpop.f32.mrf.mxu0
        %v847 = vadd.f32 0.0, %v846
        %v848 = vpop.f32.mrf.mxu0
        %v849 = vpop.f32.mrf.mxu0
        %v850 = vadd.f32 0.0, %v849
        %v851 = vpop.f32.mrf.mxu0
        %852 = vmatprep.mubr.bf16.mxu0 0
        %853 = vmatmul.mubr.bf16.gmra.mxu0 %v497
        %v854 = vpop.f32.mrf.mxu0
        %v855 = vadd.f32 0.0, %v854
        %v856 = vpop.f32.mrf.mxu0
        %v857 = vpop.f32.mrf.mxu0
        %v858 = vadd.f32 0.0, %v857
        %v859 = vpop.f32.mrf.mxu0
        %860 = vmatprep.mubr.bf16.mxu0 0
        %861 = vmatmul.mubr.bf16.gmra.mxu0 %v498
        %v862 = vpop.f32.mrf.mxu0
        %v863 = vadd.f32 0.0, %v862
        %v864 = vpop.f32.mrf.mxu0
        %v865 = vpop.f32.mrf.mxu0
        %v866 = vadd.f32 0.0, %v865
        %v867 = vpop.f32.mrf.mxu0
        %868 = vdwg.mxu0
        %v869 = vmul.f32 %v694, 0.125
        %v870 = vmul.f32 %v698, 0.125
        %v871 = vmul.f32 %v704, 0.125
        %v872 = vmul.f32 %v708, 0.125
        %v873 = vmul.f32 %v714, 0.125
        %v874 = vmul.f32 %v718, 0.125
        %v875 = vmul.f32 %v724, 0.125
        %v876 = vmul.f32 %v728, 0.125
        %v877 = vmul.f32 %v734, 0.125
        %v878 = vmul.f32 %v738, 0.125
        %v879 = vmul.f32 %v744, 0.125
        %v880 = vmul.f32 %v748, 0.125
        %v881 = vmul.f32 %v754, 0.125
        %v882 = vmul.f32 %v758, 0.125
        %v883 = vmul.f32 %v764, 0.125
        %v884 = vmul.f32 %v768, 0.125
        %v885 = vpack.c.bf16 %v870, %v869
        %v886 = vpack.c.bf16 %v872, %v871
        %v887 = vpack.c.bf16 %v874, %v873
        %v888 = vpack.c.bf16 %v876, %v875
        %v889 = vpack.c.bf16 %v878, %v877
        %v890 = vpack.c.bf16 %v880, %v879
        %v891 = vpack.c.bf16 %v882, %v881
        %v892 = vpack.c.bf16 %v884, %v883
        %v901 = vunpack.c.l.b16 %v885
        %v902 = vunpack.c.h.b16 %v885
        %v903 = vunpack.c.l.b16 %v886
        %v904 = vunpack.c.h.b16 %v886
        %v905 = vunpack.c.l.b16 %v887
        %v906 = vunpack.c.h.b16 %v887
        %v907 = vunpack.c.l.b16 %v888
        %v908 = vunpack.c.h.b16 %v888
        %v909 = vunpack.c.l.b16 %v889
        %v910 = vunpack.c.h.b16 %v889
        %v911 = vunpack.c.l.b16 %v890
        %v912 = vunpack.c.h.b16 %v890
        %v913 = vunpack.c.l.b16 %v891
        %v914 = vunpack.c.h.b16 %v891
        %v915 = vunpack.c.l.b16 %v892
        %v916 = vunpack.c.h.b16 %v892
        %v917 = vpack.c.b16 %v901, %v901
        %v918 = vpack.c.b16 %v902, %v902
        %v919 = vpack.c.b16 %v903, %v903
        %v920 = vpack.c.b16 %v904, %v904
        %v921 = vpack.c.b16 %v905, %v905
        %v922 = vpack.c.b16 %v906, %v906
        %v923 = vpack.c.b16 %v907, %v907
        %v924 = vpack.c.b16 %v908, %v908
        %v925 = vpack.c.b16 %v909, %v909
        %v926 = vpack.c.b16 %v910, %v910
        %v927 = vpack.c.b16 %v911, %v911
        %v928 = vpack.c.b16 %v912, %v912
        %v929 = vpack.c.b16 %v913, %v913
        %v930 = vpack.c.b16 %v914, %v914
        %v931 = vpack.c.b16 %v915, %v915
        %v932 = vpack.c.b16 %v916, %v916
        %949 = vst [vmem:[%s248] sm:$0xf] %v917
        %950 = vst [vmem:[%s248 + $0xc] sm:$0xf] %v918
        %951 = vst [vmem:[%s248 + $0x18] sm:$0xf] %v919
        %952 = vst [vmem:[%s248 + $0x24] sm:$0xf] %v920
        %953 = vst [vmem:[%s248 + $0x30] sm:$0xf] %v921
        %954 = vst [vmem:[%s248 + $0x3c] sm:$0xf] %v922
        %955 = vst [vmem:[%s248 + $0x48] sm:$0xf] %v923
        %956 = vst [vmem:[%s248 + $0x54] sm:$0xf] %v924
        %957 = vst [vmem:[%s248 + $0x60] sm:$0xf] %v925
        %958 = vst [vmem:[%s248 + $0x6c] sm:$0xf] %v926
        %959 = vst [vmem:[%s248 + $0x78] sm:$0xf] %v927
        %960 = vst [vmem:[%s248 + $0x84] sm:$0xf] %v928
        %961 = vst [vmem:[%s248 + $0x90] sm:$0xf] %v929
        %962 = vst [vmem:[%s248 + $0x9c] sm:$0xf] %v930
        %963 = vst [vmem:[%s248 + $0xa8] sm:$0xf] %v931
        %964 = vst [vmem:[%s248 + $0xb4] sm:$0xf] %v932
        %v965 = vpack.c.bf16 %v700, %v696
        %v966 = vpack.c.bf16 %v810, %v807
        %v967 = vpack.c.bf16 %v710, %v706
        %v968 = vpack.c.bf16 %v818, %v815
        %v969 = vpack.c.bf16 %v720, %v716
        %v970 = vpack.c.bf16 %v826, %v823
        %v971 = vpack.c.bf16 %v730, %v726
        %v972 = vpack.c.bf16 %v834, %v831
        %v973 = vpack.c.bf16 %v740, %v736
        %v974 = vpack.c.bf16 %v842, %v839
        %v975 = vpack.c.bf16 %v750, %v746
        %v976 = vpack.c.bf16 %v850, %v847
        %v977 = vpack.c.bf16 %v760, %v756
        %v978 = vpack.c.bf16 %v858, %v855
        %v979 = vpack.c.bf16 %v770, %v766
        %v980 = vpack.c.bf16 %v866, %v863
        %v997 = vunpack.c.l.b16 %v965
        %v998 = vunpack.c.l.b16 %v966
        %v999 = vunpack.c.h.b16 %v965
        %v1000 = vunpack.c.h.b16 %v966
        %v1001 = vunpack.c.l.b16 %v967
        %v1002 = vunpack.c.l.b16 %v968
        %v1003 = vunpack.c.h.b16 %v967
        %v1004 = vunpack.c.h.b16 %v968
        %v1005 = vunpack.c.l.b16 %v969
        %v1006 = vunpack.c.l.b16 %v970
        %v1007 = vunpack.c.h.b16 %v969
        %v1008 = vunpack.c.h.b16 %v970
        %v1009 = vunpack.c.l.b16 %v971
        %v1010 = vunpack.c.l.b16 %v972
        %v1011 = vunpack.c.h.b16 %v971
        %v1012 = vunpack.c.h.b16 %v972
        %v1013 = vunpack.c.l.b16 %v973
        %v1014 = vunpack.c.l.b16 %v974
        %v1015 = vunpack.c.h.b16 %v973
        %v1016 = vunpack.c.h.b16 %v974
        %v1017 = vunpack.c.l.b16 %v975
        %v1018 = vunpack.c.l.b16 %v976
        %v1019 = vunpack.c.h.b16 %v975
        %v1020 = vunpack.c.h.b16 %v976
        %v1021 = vunpack.c.l.b16 %v977
        %v1022 = vunpack.c.l.b16 %v978
        %v1023 = vunpack.c.h.b16 %v977
        %v1024 = vunpack.c.h.b16 %v978
        %v1025 = vunpack.c.l.b16 %v979
        %v1026 = vunpack.c.l.b16 %v980
        %v1027 = vunpack.c.h.b16 %v979
        %v1028 = vunpack.c.h.b16 %v980
        %v1029 = vpack.c.b16 %v998, %v997
        %v1030 = vpack.c.b16 %v1000, %v999
        %v1031 = vpack.c.b16 %v1002, %v1001
        %v1032 = vpack.c.b16 %v1004, %v1003
        %v1033 = vpack.c.b16 %v1006, %v1005
        %v1034 = vpack.c.b16 %v1008, %v1007
        %v1035 = vpack.c.b16 %v1010, %v1009
        %v1036 = vpack.c.b16 %v1012, %v1011
        %v1037 = vpack.c.b16 %v1014, %v1013
        %v1038 = vpack.c.b16 %v1016, %v1015
        %v1039 = vpack.c.b16 %v1018, %v1017
        %v1040 = vpack.c.b16 %v1020, %v1019
        %v1041 = vpack.c.b16 %v1022, %v1021
        %v1042 = vpack.c.b16 %v1024, %v1023
        %v1043 = vpack.c.b16 %v1026, %v1025
        %v1044 = vpack.c.b16 %v1028, %v1027
        %1061 = vst [vmem:[%s248 + $0x4] sm:$0xff] %v1029
        %1062 = vst [vmem:[%s248 + $0x10] sm:$0xff] %v1030
        %1063 = vst [vmem:[%s248 + $0x1c] sm:$0xff] %v1031
        %1064 = vst [vmem:[%s248 + $0x28] sm:$0xff] %v1032
        %1065 = vst [vmem:[%s248 + $0x34] sm:$0xff] %v1033
        %1066 = vst [vmem:[%s248 + $0x40] sm:$0xff] %v1034
        %1067 = vst [vmem:[%s248 + $0x4c] sm:$0xff] %v1035
        %1068 = vst [vmem:[%s248 + $0x58] sm:$0xff] %v1036
        %1069 = vst [vmem:[%s248 + $0x64] sm:$0xff] %v1037
        %1070 = vst [vmem:[%s248 + $0x70] sm:$0xff] %v1038
        %1071 = vst [vmem:[%s248 + $0x7c] sm:$0xff] %v1039
        %1072 = vst [vmem:[%s248 + $0x88] sm:$0xff] %v1040
        %1073 = vst [vmem:[%s248 + $0x94] sm:$0xff] %v1041
        %1074 = vst [vmem:[%s248 + $0xa0] sm:$0xff] %v1042
        %1075 = vst [vmem:[%s248 + $0xac] sm:$0xff] %v1043
        %1076 = vst [vmem:[%s248 + $0xb8] sm:$0xff] %v1044
        %s1077 = sand.u32 %s135, 1
        %s1078 = scalar_lea.sflag [#allocation4], %s1077
        %s1079 = sand.u32 %s135, 1
        %s1080 = smul.addr %s1079, 192
        %s1081 = scalar_lea.vmem [#allocation7], %s1080
        // Predicated region
        $region45: #{tpu_custom_call.1} parent=35 // pred_check
          %p1082 = pneg %p145
        $region46: #{tpu_custom_call.1} parent=35 // pred_check_branch
          %1084 = sbr.rel (%p1082) target = $region48
        $region47: #{tpu_custom_call.1} parent=35 // pred_region
          %s1085 = smul.u32 16, %s27
          %s1087 = ssub.s32 3072, 3072
          %1088 = vsyncadd %s1078, %s1087
          %s1089 = smul.addr %s1085, 3
          %s1090 = smul.addr %s26, 96
          %s1091 = sadd.s32 %s1089, %s1090
          %s1092 = smul.addr %s1091, 64
          %s1093 = scalar_lea.hbm %s4, %s1092
          %s1094 = sshll.u32 %s1081, 4
          %s1095 = int_to_ptr.vmem [resolvable:$true] %s1094
          %1100 = dma.vmem_to_hbm [thread:$0]  %s1095, 3072, %s1093, %s1078, 192, 192, 12
        $region48: #{tpu_custom_call.1} parent=35 // pred_fallthru
          _
      $region36: #{tpu_custom_call.1} parent=5 // pred_fallthru
        _
      %p1101 = scmp.le.s32.totalorder 2, %s17
      // Predicated region
      $region49: #{tpu_custom_call.1} parent=5 // pred_check
        %p1102 = pneg %p1101
      $region50: #{tpu_custom_call.1} parent=5 // pred_check_branch
        %1104 = sbr.rel (%p1102) target = $region52
      $region51: #{tpu_custom_call.1} parent=5 // pred_region
        %s1105 = ssub.s32 %s17, 2
        // Predicated region
        $region53: #{tpu_custom_call.1} parent=51 // pred_check
          %p1106 = pneg %p151
        $region54: #{tpu_custom_call.1} parent=51 // pred_check_branch
          %1108 = sbr.rel (%p1106) target = $region56
        $region55: #{tpu_custom_call.1} parent=51 // pred_region
          %s1109 = sand.u32 %s136, 1
          %s1110 = scalar_lea.sflag [#allocation4], %s1109
          %s1111 = sand.u32 %s136, 1
          %s1112 = smul.addr %s1111, 192
          %s1113 = scalar_lea.vmem [#allocation7], %s1112
          %1114 = dma.done %s1110, 3072
        $region56: #{tpu_custom_call.1} parent=51 // pred_fallthru
          _
      $region52: #{tpu_custom_call.1} parent=5 // pred_fallthru
        _
    $region6: #{tpu_custom_call.1} parent=1 // loop_footer
      %s21 = sadd.s32 1, %s17
    $region7: #{tpu_custom_call.1} parent=1 // loop_footer_branch
      %16 = sbr.rel target = $region3
    $region8: #{tpu_custom_call.1} parent=1 // loop_exit
      _
    %1115 = vsyncpa [#allocation3], 1
    %s1116 = scalar_lea.sflag [#allocation3], 1
    %1117 = vsyncpa %s1116, 1
    %1118 = vsyncpa [#allocation6], 1
    %1119 = vsyncpa [#allocation4], 1
    %s1120 = scalar_lea.sflag [#allocation4], 1
    %1121 = vsyncpa %s1120, 1

</llo_original>
